<compile_context>
chip_gen: v5e
topology: v5e:2x2
jax: 0.10.0
libtpu: 0.0.40
codegen_flags: <defaults>
</compile_context>

<pallas_src>
from functools import partial

import numpy as np
import jax
import jax.numpy as jnp
from jax.experimental import pallas as pl
from jax.experimental.pallas import tpu as pltpu


# ----------------------------------------------------------------------------
# Fused kernel (one batch element per grid step), fully channel-major (C, S)
#   x_ref    : (1, C, S)      input, NCHW flattened over (H, W)       [lane-dense]
#   mask_ref : (9, S)         0/1 conv boundary masks, tap-ordered (dy, dx)
#   p_ref    : (C, 10C+7) f32 packed params:
#                [0:9C]   im2col conv weight (C_out, 9*C_in), cols ordered (dy,dx,cin)
#                [9C:10C] out-proj weight (C_out, C_in)
#                cols 10C..10C+6 : bn_scale, bn_bias, ln_g, ln_b, b_out, b_q*, b_v
#                (b_q pre-scaled by 1/sqrt(head_dim); k bias dropped: exact)
#   wqkv_ref : (3C, C) bf16   QKV weight, channel-major (q rows pre-scaled)
#   out_ref  : (1, C, S)      LN(x) + MHA(LN(x)), channel-major        [lane-dense]
# ----------------------------------------------------------------------------
def _gclb_fused_kernel(x_ref, mask_ref, p_ref, wqkv_ref, out_ref,
                       *, H, W, C, heads, head_dim, eps):
    S = H * W
    x_cs = x_ref[0]                                        # (C, S) f32

    # ---- 3x3 conv as channel-major im2col: lane rolls + boundary masks
    taps = []
    t = 0
    for dy in range(3):
        for dx in range(3):
            d = (dy - 1) * W + (dx - 1)
            if d == 0:
                tap = x_cs                                 # center tap, mask == 1
            else:
                rolled = pltpu.roll(x_cs, (-d) % S, axis=1)  # rolled[s] = x[s + d]
                tap = rolled * mask_ref[t:t + 1, :]        # zero out wrapped pixels
            taps.append(tap)
            t += 1
    patches = jnp.concatenate(taps, axis=0)                # (9C, S)

    pc = 10 * C
    w_conv = p_ref[:, 0:9 * C]                             # (C, 9C) f32
    y = jnp.dot(w_conv, patches, preferred_element_type=jnp.float32)   # (C, S)
    # folded BatchNorm (inference) + ReLU, per-channel broadcast along lanes
    y = jnp.maximum(y * p_ref[:, pc:pc + 1] + p_ref[:, pc + 1:pc + 2], 0.0)

    # ---- LayerNorm over channels (sublane axis)
    mu = jnp.mean(y, axis=0, keepdims=True)                # (1, S)
    yc = y - mu
    var = jnp.mean(yc * yc, axis=0, keepdims=True)
    xn = yc * jax.lax.rsqrt(var + eps) * p_ref[:, pc + 2:pc + 3] \
         + p_ref[:, pc + 3:pc + 4]                         # (C, S) f32

    # ---- fused QKV projection: (3C, C) @ (C, S), bf16 operands / f32 acc
    qkv = jnp.dot(wqkv_ref[...], xn.astype(jnp.bfloat16),
                  preferred_element_type=jnp.float32)      # (3C, S)
    q_all = qkv[0:C, :] + p_ref[:, pc + 5:pc + 6]          # scale folded into W_q/b_q
    k_all = qkv[C:2 * C, :]                                # k bias dropped (exact)
    v_all = qkv[2 * C:3 * C, :] + p_ref[:, pc + 6:pc + 7]

    k_all_t = k_all.T                                      # (S, C): only transpose left

    head_outs = []
    for h in range(heads):                                 # heads is small & static
        lo = h * head_dim
        hi = lo + head_dim
        q = q_all[lo:hi, :].astype(jnp.bfloat16)           # (hd, S)
        kt = k_all_t[:, lo:hi].astype(jnp.bfloat16)        # (S, hd)
        v = v_all[lo:hi, :].astype(jnp.bfloat16)           # (hd, S)
        # transposed scores: st[j, i] = <k_j, q_i>; softmax over keys (axis 0)
        st = jnp.dot(kt, q, preferred_element_type=jnp.float32)        # (S_k, S_q)
        st = st - jnp.max(st, axis=0, keepdims=True)
        p = jnp.exp(st)
        l = jnp.sum(p, axis=0, keepdims=True)              # (1, S_q)
        o = jnp.dot(v, p.astype(jnp.bfloat16),
                    preferred_element_type=jnp.float32)    # (hd, S_q) lane-dense
        # normalize AFTER the PV matmul; EUP approximate reciprocal
        head_outs.append(o * pl.reciprocal(l, approx=True))

    o_all = jnp.concatenate(head_outs, axis=0).astype(jnp.bfloat16)    # (C, S)

    wo = p_ref[:, 9 * C:10 * C].astype(jnp.bfloat16)       # (C, C)
    attn = jnp.dot(wo, o_all, preferred_element_type=jnp.float32) \
           + p_ref[:, pc + 4:pc + 5]                       # (C, S)

    out_ref[0] = xn + attn                                 # residual, lane-dense


# ----------------------------------------------------------------------------
# Conv boundary masks (host-side constant, tap-ordered (dy, dx) row-major)
# ----------------------------------------------------------------------------
def _conv_masks(H, W):
    S = H * W
    r = np.arange(S) // W
    c = np.arange(S) % W
    m = np.zeros((9, S), np.float32)
    t = 0
    for dy in (-1, 0, 1):
        for dx in (-1, 0, 1):
            ok = (r + dy >= 0) & (r + dy < H) & (c + dx >= 0) & (c + dx < W)
            m[t] = ok.astype(np.float32)
            t += 1
    return jnp.asarray(m)


# ----------------------------------------------------------------------------
# Wrapper: NCHW in -> NCHW out; only free reshapes outside the kernel
# ----------------------------------------------------------------------------
def global_contextual_local_block(x_nchw, kparams, heads):
    B, C, H, W = x_nchw.shape
    S = H * W
    hd = C // heads
    NP = kparams["pblock"].shape[1]

    x_cs = x_nchw.reshape(B, C, S).astype(jnp.float32)     # pure reshape, no transpose
    masks = _conv_masks(H, W)

    flops = 2 * B * (S * 9 * C * C + S * C * 3 * C
                     + heads * 2 * S * S * hd + S * C * C)
    cost = pl.CostEstimate(
        flops=int(flops),
        transcendentals=int(B * heads * S * S),
        bytes_accessed=int(2 * B * C * S * 4 + C * NP * 4 + 3 * C * C * 2 + 9 * S * 4),
    )

    out_cs = pl.pallas_call(
        partial(_gclb_fused_kernel, H=H, W=W, C=C, heads=heads, head_dim=hd, eps=1e-5),
        out_shape=jax.ShapeDtypeStruct((B, C, S), jnp.float32),
        grid=(B,),
        in_specs=[
            pl.BlockSpec((1, C, S), lambda b: (b, 0, 0)),      # x (lane-dense)
            pl.BlockSpec((9, S), lambda b: (0, 0)),            # conv boundary masks
            pl.BlockSpec((C, NP), lambda b: (0, 0)),            # packed f32 params
            pl.BlockSpec((3 * C, C), lambda b: (0, 0)),          # qkv weight (bf16)
        ],
        out_specs=pl.BlockSpec((1, C, S), lambda b: (b, 0, 0)),
        compiler_params=pltpu.CompilerParams(
            dimension_semantics=("parallel",),                   # B=2 -> both v7x TCs
            vmem_limit_bytes=32 * 1024 * 1024,
        ),
        cost_estimate=cost,
    )(x_cs, masks, kparams["pblock"], kparams["wqkv"])

    # 'b c (h w) -> b c h w' : pure reshape, no data movement
    return out_cs.reshape(B, C, H, W)


# ----------------------------------------------------------------------------
# Deterministic parameters: torch-layout "raw" + kernel-layout repack
# ----------------------------------------------------------------------------
def make_params(key, dim, heads):
    ks = jax.random.split(key, 12)
    f = jnp.float32
    raw = dict(
        conv_w=0.1 * jax.random.normal(ks[0], (dim, dim, 3, 3), f),   # OIHW
        conv_b=0.1 * jax.random.normal(ks[1], (dim,), f),
        bn_gamma=1.0 + 0.1 * jax.random.normal(ks[2], (dim,), f),
        bn_beta=0.1 * jax.random.normal(ks[3], (dim,), f),
        bn_mean=0.1 * jax.random.normal(ks[4], (dim,), f),
        bn_var=0.5 + jnp.abs(jax.random.normal(ks[5], (dim,), f)),
        ln_g=1.0 + 0.1 * jax.random.normal(ks[6], (dim,), f),
        ln_b=0.1 * jax.random.normal(ks[7], (dim,), f),
        in_proj_w=0.2 * jax.random.normal(ks[8], (3 * dim, dim), f),  # torch MHA
        in_proj_b=0.1 * jax.random.normal(ks[9], (3 * dim,), f),
        out_proj_w=0.2 * jax.random.normal(ks[10], (dim, dim), f),
        out_proj_b=0.1 * jax.random.normal(ks[11], (dim,), f),
    )

    bn_eps = 1e-5
    inv = raw["bn_gamma"] / jnp.sqrt(raw["bn_var"] + bn_eps)
    bn_scale = inv
    bn_bias = (raw["conv_b"] - raw["bn_mean"]) * inv + raw["bn_beta"]

    # channel-major im2col conv weight: (C_out, 9*C_in), columns ordered (dy, dx, cin)
    w_conv_cm = raw["conv_w"].transpose(0, 2, 3, 1).reshape(dim, 9 * dim)

    hd = dim // heads
    scale = 1.0 / float(np.sqrt(hd))
    # channel-major qkv weight = in_proj_w as-is (3C, C); fold attn scale into q rows
    qscale = jnp.concatenate([jnp.full((dim,), scale, f), jnp.ones((2 * dim,), f)])
    wqkv_cm = (raw["in_proj_w"] * qscale[:, None]).astype(jnp.bfloat16)
    bq = raw["in_proj_b"][:dim] * scale           # q bias (pre-scaled)
    bv = raw["in_proj_b"][2 * dim:]               # v bias; k bias dropped (exact)

    pblock = jnp.concatenate(
        [w_conv_cm,                               # [:, 0:9C]
         raw["out_proj_w"],                       # [:, 9C:10C]
         bn_scale[:, None], bn_bias[:, None],     # cols 10C, 10C+1
         raw["ln_g"][:, None], raw["ln_b"][:, None],   # 10C+2, 10C+3
         raw["out_proj_b"][:, None],              # 10C+4
         bq[:, None], bv[:, None]],               # 10C+5, 10C+6
        axis=1).astype(f)                         # (C, 10C+7)

    kparams = dict(pblock=pblock, wqkv=wqkv_cm)
    return raw, kparams


# ----------------------------------------------------------------------------
# Pure-JAX reference (torch semantics, BN in eval mode)
# ----------------------------------------------------------------------------
def reference(x_nchw, raw, heads):
    B, C, H, W = x_nchw.shape
    hd = C // heads
    y = jax.lax.conv_general_dilated(
        x_nchw, raw["conv_w"], window_strides=(1, 1), padding="SAME",
        dimension_numbers=("NCHW", "OIHW", "NCHW"))
    y = y + raw["conv_b"][None, :, None, None]
    y = (y - raw["bn_mean"][None, :, None, None]) / jnp.sqrt(
        raw["bn_var"][None, :, None, None] + 1e-5)
    y = y * raw["bn_gamma"][None, :, None, None] + raw["bn_beta"][None, :, None, None]
    y = jnp.maximum(y, 0.0)
    xs = y.reshape(B, C, H * W).transpose(0, 2, 1)                    # (B,S,C)
    mu = xs.mean(-1, keepdims=True)
    va = ((xs - mu) ** 2).mean(-1, keepdims=True)
    xn = (xs - mu) / jnp.sqrt(va + 1e-5) * raw["ln_g"] + raw["ln_b"]
    qkv = xn @ raw["in_proj_w"].T + raw["in_proj_b"]
    q, k, v = jnp.split(qkv, 3, axis=-1)

    def heads_view(t):
        return t.reshape(B, -1, heads, hd).transpose(0, 2, 1, 3)      # (B,h,S,hd)

    qh, kh, vh = heads_view(q), heads_view(k), heads_view(v)
    s = jnp.einsum("bhqd,bhkd->bhqk", qh, kh) / jnp.sqrt(jnp.float32(hd))
    p = jax.nn.softmax(s, axis=-1)
    o = jnp.einsum("bhqk,bhkd->bhqd", p, vh).transpose(0, 2, 1, 3).reshape(B, -1, C)
    attn = o @ raw["out_proj_w"].T + raw["out_proj_b"]
    out = xn + attn
    return out.transpose(0, 2, 1).reshape(B, C, H, W)


if __name__ == "__main__":
    dim, heads = 8, 2
    B, H, W = 2, 16, 16

    key = jax.random.PRNGKey(0)
    kx, kp = jax.random.split(key)
    x = jax.random.normal(kx, (B, dim, H, W), jnp.float32)
    raw, kparams = make_params(kp, dim, heads)

    out = jax.block_until_ready(global_contextual_local_block(x, kparams, heads))
    ref = jax.block_until_ready(reference(x, raw, heads))

    assert out.shape == (B, dim, H, W)
    err = float(jnp.max(jnp.abs(out - ref)))
    assert np.allclose(np.asarray(out), np.asarray(ref), atol=2e-2, rtol=2e-2), (
        "max abs err %g" % err)
    print("KERNEL_OK")
</pallas_src>

<mosaic_0001>
module attributes {stable_mosaic.version = 11 : i64} {
  func.func @_gclb_fused_kernel(%arg0: i32, %arg1: memref<1x8x256xf32, #tpu.memory_space<vmem>>, %arg2: memref<9x256xf32, #tpu.memory_space<vmem>>, %arg3: memref<8x87xf32, #tpu.memory_space<vmem>>, %arg4: memref<24x8xbf16, #tpu.memory_space<vmem>>, %arg5: memref<1x8x256xf32, #tpu.memory_space<vmem>>) attributes {dimension_semantics = [#tpu.dimension_semantics<parallel>], iteration_bounds = array<i64: 2>, scalar_prefetch = 0 : i64, scratch_operands = 0 : i64, tpu.core_type = #tpu.core_type<tc>, window_params = [{transform_indices = @transform_0, window_bounds = array<i64: 1, 8, 256>}, {pipeline_mode = #tpu.pipeline_mode<synchronous>, transform_indices = @transform_1, window_bounds = array<i64: 9, 256>}, {pipeline_mode = #tpu.pipeline_mode<synchronous>, transform_indices = @transform_2, window_bounds = array<i64: 8, 87>}, {pipeline_mode = #tpu.pipeline_mode<synchronous>, transform_indices = @transform_3, window_bounds = array<i64: 24, 8>}, {transform_indices = @transform_4, window_bounds = array<i64: 1, 8, 256>}]} {
    %c0 = arith.constant 0 : index
    %c0_0 = arith.constant 0 : index
    %c0_1 = arith.constant 0 : index
    %0 = vector.load %arg1[%c0, %c0_0, %c0_1] : memref<1x8x256xf32, #tpu.memory_space<vmem>>, vector<1x8x256xf32>
    %1 = vector.shape_cast %0 : vector<1x8x256xf32> to vector<8x256xf32>
    %c17_i32 = arith.constant 17 : i32
    %2 = tpu.dynamic_rotate %1 by %c17_i32 dim 1 : vector<8x256xf32>, i32 -> vector<8x256xf32>
    %c0_2 = arith.constant 0 : index
    %c0_3 = arith.constant 0 : index
    %3 = vector.load %arg2[%c0_2, %c0_3] : memref<9x256xf32, #tpu.memory_space<vmem>>, vector<1x256xf32>
    %4 = vector.broadcast %3 : vector<1x256xf32> to vector<8x256xf32>
    %5 = arith.mulf %2, %4 : vector<8x256xf32>
    %c16_i32 = arith.constant 16 : i32
    %6 = tpu.dynamic_rotate %1 by %c16_i32 dim 1 : vector<8x256xf32>, i32 -> vector<8x256xf32>
    %c1 = arith.constant 1 : index
    %c0_4 = arith.constant 0 : index
    %7 = vector.load %arg2[%c1, %c0_4] : memref<9x256xf32, #tpu.memory_space<vmem>>, vector<1x256xf32>
    %8 = vector.broadcast %7 : vector<1x256xf32> to vector<8x256xf32>
    %9 = arith.mulf %6, %8 : vector<8x256xf32>
    %c15_i32 = arith.constant 15 : i32
    %10 = tpu.dynamic_rotate %1 by %c15_i32 dim 1 : vector<8x256xf32>, i32 -> vector<8x256xf32>
    %c2 = arith.constant 2 : index
    %c0_5 = arith.constant 0 : index
    %11 = vector.load %arg2[%c2, %c0_5] : memref<9x256xf32, #tpu.memory_space<vmem>>, vector<1x256xf32>
    %12 = vector.broadcast %11 : vector<1x256xf32> to vector<8x256xf32>
    %13 = arith.mulf %10, %12 : vector<8x256xf32>
    %c1_i32 = arith.constant 1 : i32
    %14 = tpu.dynamic_rotate %1 by %c1_i32 dim 1 : vector<8x256xf32>, i32 -> vector<8x256xf32>
    %c3 = arith.constant 3 : index
    %c0_6 = arith.constant 0 : index
    %15 = vector.load %arg2[%c3, %c0_6] : memref<9x256xf32, #tpu.memory_space<vmem>>, vector<1x256xf32>
    %16 = vector.broadcast %15 : vector<1x256xf32> to vector<8x256xf32>
    %17 = arith.mulf %14, %16 : vector<8x256xf32>
    %c255_i32 = arith.constant 255 : i32
    %18 = tpu.dynamic_rotate %1 by %c255_i32 dim 1 : vector<8x256xf32>, i32 -> vector<8x256xf32>
    %c5 = arith.constant 5 : index
    %c0_7 = arith.constant 0 : index
    %19 = vector.load %arg2[%c5, %c0_7] : memref<9x256xf32, #tpu.memory_space<vmem>>, vector<1x256xf32>
    %20 = vector.broadcast %19 : vector<1x256xf32> to vector<8x256xf32>
    %21 = arith.mulf %18, %20 : vector<8x256xf32>
    %c241_i32 = arith.constant 241 : i32
    %22 = tpu.dynamic_rotate %1 by %c241_i32 dim 1 : vector<8x256xf32>, i32 -> vector<8x256xf32>
    %c6 = arith.constant 6 : index
    %c0_8 = arith.constant 0 : index
    %23 = vector.load %arg2[%c6, %c0_8] : memref<9x256xf32, #tpu.memory_space<vmem>>, vector<1x256xf32>
    %24 = vector.broadcast %23 : vector<1x256xf32> to vector<8x256xf32>
    %25 = arith.mulf %22, %24 : vector<8x256xf32>
    %c240_i32 = arith.constant 240 : i32
    %26 = tpu.dynamic_rotate %1 by %c240_i32 dim 1 : vector<8x256xf32>, i32 -> vector<8x256xf32>
    %c7 = arith.constant 7 : index
    %c0_9 = arith.constant 0 : index
    %27 = vector.load %arg2[%c7, %c0_9] : memref<9x256xf32, #tpu.memory_space<vmem>>, vector<1x256xf32>
    %28 = vector.broadcast %27 : vector<1x256xf32> to vector<8x256xf32>
    %29 = arith.mulf %26, %28 : vector<8x256xf32>
    %c239_i32 = arith.constant 239 : i32
    %30 = tpu.dynamic_rotate %1 by %c239_i32 dim 1 : vector<8x256xf32>, i32 -> vector<8x256xf32>
    %c8 = arith.constant 8 : index
    %c0_10 = arith.constant 0 : index
    %31 = vector.load %arg2[%c8, %c0_10] : memref<9x256xf32, #tpu.memory_space<vmem>>, vector<1x256xf32>
    %32 = vector.broadcast %31 : vector<1x256xf32> to vector<8x256xf32>
    %33 = arith.mulf %30, %32 : vector<8x256xf32>
    %34 = tpu.concatenate %5, %9, %13, %17, %1, %21, %25, %29, %33 in 0 : vector<8x256xf32>, vector<8x256xf32>, vector<8x256xf32>, vector<8x256xf32>, vector<8x256xf32>, vector<8x256xf32>, vector<8x256xf32>, vector<8x256xf32>, vector<8x256xf32> -> vector<72x256xf32>
    %c0_11 = arith.constant 0 : index
    %c0_12 = arith.constant 0 : index
    %35 = vector.load %arg3[%c0_11, %c0_12] : memref<8x87xf32, #tpu.memory_space<vmem>>, vector<8x72xf32>
    %cst = arith.constant dense<0.000000e+00> : vector<8x256xf32>
    %36 = tpu.matmul %35, %34, %cst {dimension_numbers = #tpu.dot_dimension_numbers<[1], [0], [0], [1], [0, 0, 1, 1], [], []>} : vector<8x72xf32>, vector<72x256xf32>, vector<8x256xf32> -> vector<8x256xf32>
    %c0_13 = arith.constant 0 : index
    %c80 = arith.constant 80 : index
    %37 = vector.load %arg3[%c0_13, %c80] : memref<8x87xf32, #tpu.memory_space<vmem>>, vector<8x1xf32>
    %38 = vector.broadcast %37 : vector<8x1xf32> to vector<8x256xf32>
    %39 = arith.mulf %36, %38 : vector<8x256xf32>
    %c0_14 = arith.constant 0 : index
    %c81 = arith.constant 81 : index
    %40 = vector.load %arg3[%c0_14, %c81] : memref<8x87xf32, #tpu.memory_space<vmem>>, vector<8x1xf32>
    %41 = vector.broadcast %40 : vector<8x1xf32> to vector<8x256xf32>
    %42 = arith.addf %39, %41 : vector<8x256xf32>
    %cst_15 = arith.constant 0.000000e+00 : f32
    %43 = vector.broadcast %cst_15 : f32 to vector<8x256xf32>
    %44 = arith.maximumf %42, %43 : vector<8x256xf32>
    %cst_16 = arith.constant dense<0.000000e+00> : vector<256xf32>
    %45 = vector.multi_reduction <add>, %44, %cst_16 [0] : vector<8x256xf32> to vector<256xf32>
    %46 = vector.shape_cast %45 : vector<256xf32> to vector<1x256xf32>
    %cst_17 = arith.constant 8.000000e+00 : f32
    %47 = vector.broadcast %cst_17 : f32 to vector<1x256xf32>
    %48 = arith.divf %46, %47 : vector<1x256xf32>
    %49 = vector.broadcast %48 : vector<1x256xf32> to vector<8x256xf32>
    %50 = arith.subf %44, %49 : vector<8x256xf32>
    %51 = arith.mulf %50, %50 : vector<8x256xf32>
    %cst_18 = arith.constant dense<0.000000e+00> : vector<256xf32>
    %52 = vector.multi_reduction <add>, %51, %cst_18 [0] : vector<8x256xf32> to vector<256xf32>
    %53 = vector.shape_cast %52 : vector<256xf32> to vector<1x256xf32>
    %cst_19 = arith.constant 8.000000e+00 : f32
    %54 = vector.broadcast %cst_19 : f32 to vector<1x256xf32>
    %55 = arith.divf %53, %54 : vector<1x256xf32>
    %cst_20 = arith.constant 9.99999974E-6 : f32
    %56 = vector.broadcast %cst_20 : f32 to vector<1x256xf32>
    %57 = arith.addf %55, %56 : vector<1x256xf32>
    %58 = math.rsqrt %57 : vector<1x256xf32>
    %59 = vector.broadcast %58 : vector<1x256xf32> to vector<8x256xf32>
    %60 = arith.mulf %50, %59 : vector<8x256xf32>
    %c0_21 = arith.constant 0 : index
    %c82 = arith.constant 82 : index
    %61 = vector.load %arg3[%c0_21, %c82] : memref<8x87xf32, #tpu.memory_space<vmem>>, vector<8x1xf32>
    %62 = vector.broadcast %61 : vector<8x1xf32> to vector<8x256xf32>
    %63 = arith.mulf %60, %62 : vector<8x256xf32>
    %c0_22 = arith.constant 0 : index
    %c83 = arith.constant 83 : index
    %64 = vector.load %arg3[%c0_22, %c83] : memref<8x87xf32, #tpu.memory_space<vmem>>, vector<8x1xf32>
    %65 = vector.broadcast %64 : vector<8x1xf32> to vector<8x256xf32>
    %66 = arith.addf %63, %65 : vector<8x256xf32>
    %c0_23 = arith.constant 0 : index
    %c0_24 = arith.constant 0 : index
    %67 = vector.load %arg4[%c0_23, %c0_24] : memref<24x8xbf16, #tpu.memory_space<vmem>>, vector<24x8xbf16>
    %68 = arith.truncf %66 : vector<8x256xf32> to vector<8x256xbf16>
    %cst_25 = arith.constant dense<0.000000e+00> : vector<24x256xf32>
    %69 = tpu.matmul %67, %68, %cst_25 {dimension_numbers = #tpu.dot_dimension_numbers<[1], [0], [0], [1], [0, 0, 1, 1], [], []>} : vector<24x8xbf16>, vector<8x256xbf16>, vector<24x256xf32> -> vector<24x256xf32>
    %70 = vector.extract_strided_slice %69 {offsets = [0, 0], sizes = [8, 256], strides = [1, 1]} : vector<24x256xf32> to vector<8x256xf32>
    %c0_26 = arith.constant 0 : index
    %c85 = arith.constant 85 : index
    %71 = vector.load %arg3[%c0_26, %c85] : memref<8x87xf32, #tpu.memory_space<vmem>>, vector<8x1xf32>
    %72 = vector.broadcast %71 : vector<8x1xf32> to vector<8x256xf32>
    %73 = arith.addf %70, %72 : vector<8x256xf32>
    %74 = vector.extract_strided_slice %69 {offsets = [8, 0], sizes = [8, 256], strides = [1, 1]} : vector<24x256xf32> to vector<8x256xf32>
    %75 = vector.extract_strided_slice %69 {offsets = [16, 0], sizes = [8, 256], strides = [1, 1]} : vector<24x256xf32> to vector<8x256xf32>
    %c0_27 = arith.constant 0 : index
    %c86 = arith.constant 86 : index
    %76 = vector.load %arg3[%c0_27, %c86] : memref<8x87xf32, #tpu.memory_space<vmem>>, vector<8x1xf32>
    %77 = vector.broadcast %76 : vector<8x1xf32> to vector<8x256xf32>
    %78 = arith.addf %75, %77 : vector<8x256xf32>
    %79 = tpu.transpose %74, [1, 0] : vector<8x256xf32> -> vector<256x8xf32>
    %80 = vector.extract_strided_slice %73 {offsets = [0, 0], sizes = [4, 256], strides = [1, 1]} : vector<8x256xf32> to vector<4x256xf32>
    %81 = arith.truncf %80 : vector<4x256xf32> to vector<4x256xbf16>
    %82 = vector.extract_strided_slice %79 {offsets = [0, 0], sizes = [256, 4], strides = [1, 1]} : vector<256x8xf32> to vector<256x4xf32>
    %83 = arith.truncf %82 : vector<256x4xf32> to vector<256x4xbf16>
    %84 = vector.extract_strided_slice %78 {offsets = [0, 0], sizes = [4, 256], strides = [1, 1]} : vector<8x256xf32> to vector<4x256xf32>
    %85 = arith.truncf %84 : vector<4x256xf32> to vector<4x256xbf16>
    %cst_28 = arith.constant dense<0.000000e+00> : vector<256x256xf32>
    %86 = tpu.matmul %83, %81, %cst_28 {dimension_numbers = #tpu.dot_dimension_numbers<[1], [0], [0], [1], [0, 0, 1, 1], [], []>} : vector<256x4xbf16>, vector<4x256xbf16>, vector<256x256xf32> -> vector<256x256xf32>
    %cst_29 = arith.constant dense<0xFF800000> : vector<256xf32>
    %87 = vector.multi_reduction <maximumf>, %86, %cst_29 [0] : vector<256x256xf32> to vector<256xf32>
    %88 = vector.shape_cast %87 : vector<256xf32> to vector<1x256xf32>
    %89 = vector.broadcast %88 : vector<1x256xf32> to vector<256x256xf32>
    %90 = arith.subf %86, %89 : vector<256x256xf32>
    %91 = math.exp %90 : vector<256x256xf32>
    %cst_30 = arith.constant dense<0.000000e+00> : vector<256xf32>
    %92 = vector.multi_reduction <add>, %91, %cst_30 [0] : vector<256x256xf32> to vector<256xf32>
    %93 = vector.shape_cast %92 : vector<256xf32> to vector<1x256xf32>
    %94 = arith.truncf %91 : vector<256x256xf32> to vector<256x256xbf16>
    %cst_31 = arith.constant dense<0.000000e+00> : vector<4x256xf32>
    %95 = tpu.matmul %85, %94, %cst_31 {dimension_numbers = #tpu.dot_dimension_numbers<[1], [0], [0], [1], [0, 0, 1, 1], [], []>} : vector<4x256xbf16>, vector<256x256xbf16>, vector<4x256xf32> -> vector<4x256xf32>
    %96 = tpu.reciprocal %93 {approx = true} : vector<1x256xf32> -> vector<1x256xf32>
    %97 = vector.broadcast %96 : vector<1x256xf32> to vector<4x256xf32>
    %98 = arith.mulf %95, %97 : vector<4x256xf32>
    %99 = vector.extract_strided_slice %73 {offsets = [4, 0], sizes = [4, 256], strides = [1, 1]} : vector<8x256xf32> to vector<4x256xf32>
    %100 = arith.truncf %99 : vector<4x256xf32> to vector<4x256xbf16>
    %101 = vector.extract_strided_slice %79 {offsets = [0, 4], sizes = [256, 4], strides = [1, 1]} : vector<256x8xf32> to vector<256x4xf32>
    %102 = arith.truncf %101 : vector<256x4xf32> to vector<256x4xbf16>
    %103 = vector.extract_strided_slice %78 {offsets = [4, 0], sizes = [4, 256], strides = [1, 1]} : vector<8x256xf32> to vector<4x256xf32>
    %104 = arith.truncf %103 : vector<4x256xf32> to vector<4x256xbf16>
    %cst_32 = arith.constant dense<0.000000e+00> : vector<256x256xf32>
    %105 = tpu.matmul %102, %100, %cst_32 {dimension_numbers = #tpu.dot_dimension_numbers<[1], [0], [0], [1], [0, 0, 1, 1], [], []>} : vector<256x4xbf16>, vector<4x256xbf16>, vector<256x256xf32> -> vector<256x256xf32>
    %cst_33 = arith.constant dense<0xFF800000> : vector<256xf32>
    %106 = vector.multi_reduction <maximumf>, %105, %cst_33 [0] : vector<256x256xf32> to vector<256xf32>
    %107 = vector.shape_cast %106 : vector<256xf32> to vector<1x256xf32>
    %108 = vector.broadcast %107 : vector<1x256xf32> to vector<256x256xf32>
    %109 = arith.subf %105, %108 : vector<256x256xf32>
    %110 = math.exp %109 : vector<256x256xf32>
    %cst_34 = arith.constant dense<0.000000e+00> : vector<256xf32>
    %111 = vector.multi_reduction <add>, %110, %cst_34 [0] : vector<256x256xf32> to vector<256xf32>
    %112 = vector.shape_cast %111 : vector<256xf32> to vector<1x256xf32>
    %113 = arith.truncf %110 : vector<256x256xf32> to vector<256x256xbf16>
    %cst_35 = arith.constant dense<0.000000e+00> : vector<4x256xf32>
    %114 = tpu.matmul %104, %113, %cst_35 {dimension_numbers = #tpu.dot_dimension_numbers<[1], [0], [0], [1], [0, 0, 1, 1], [], []>} : vector<4x256xbf16>, vector<256x256xbf16>, vector<4x256xf32> -> vector<4x256xf32>
    %115 = tpu.reciprocal %112 {approx = true} : vector<1x256xf32> -> vector<1x256xf32>
    %116 = vector.broadcast %115 : vector<1x256xf32> to vector<4x256xf32>
    %117 = arith.mulf %114, %116 : vector<4x256xf32>
    %118 = tpu.concatenate %98, %117 in 0 : vector<4x256xf32>, vector<4x256xf32> -> vector<8x256xf32>
    %119 = arith.truncf %118 : vector<8x256xf32> to vector<8x256xbf16>
    %c0_36 = arith.constant 0 : index
    %c72 = arith.constant 72 : index
    %120 = vector.load %arg3[%c0_36, %c72] : memref<8x87xf32, #tpu.memory_space<vmem>>, vector<8x8xf32>
    %121 = arith.truncf %120 : vector<8x8xf32> to vector<8x8xbf16>
    %cst_37 = arith.constant dense<0.000000e+00> : vector<8x256xf32>
    %122 = tpu.matmul %121, %119, %cst_37 {dimension_numbers = #tpu.dot_dimension_numbers<[1], [0], [0], [1], [0, 0, 1, 1], [], []>} : vector<8x8xbf16>, vector<8x256xbf16>, vector<8x256xf32> -> vector<8x256xf32>
    %c0_38 = arith.constant 0 : index
    %c84 = arith.constant 84 : index
    %123 = vector.load %arg3[%c0_38, %c84] : memref<8x87xf32, #tpu.memory_space<vmem>>, vector<8x1xf32>
    %124 = vector.broadcast %123 : vector<8x1xf32> to vector<8x256xf32>
    %125 = arith.addf %122, %124 : vector<8x256xf32>
    %126 = arith.addf %66, %125 : vector<8x256xf32>
    %c0_39 = arith.constant 0 : index
    %c0_40 = arith.constant 0 : index
    %c0_41 = arith.constant 0 : index
    %127 = vector.load %arg5[%c0_39, %c0_40, %c0_41] : memref<1x8x256xf32, #tpu.memory_space<vmem>>, vector<1x8x256xf32>
    %128 = vector.shape_cast %127 : vector<1x8x256xf32> to vector<8x256xf32>
    %129 = vector.shape_cast %126 : vector<8x256xf32> to vector<1x8x256xf32>
    tpu.vector_store %arg5[%c0_39, %c0_40, %c0_41], %129 {strides = array<i32>} : memref<1x8x256xf32, #tpu.memory_space<vmem>>, vector<1x8x256xf32>,
    return
  }
  func.func @transform_0(%arg0: i32) -> (i32, i32, i32) {
    %c0_i32 = arith.constant 0 : i32
    %c0_i32_0 = arith.constant 0 : i32
    %c0_i32_1 = arith.constant 0 : i32
    return %arg0, %c0_i32, %c0_i32_0 : i32, i32, i32
  }
  func.func @transform_1(%arg0: i32) -> (i32, i32) {
    %c0_i32 = arith.constant 0 : i32
    %c0_i32_0 = arith.constant 0 : i32
    %c0_i32_1 = arith.constant 0 : i32
    return %c0_i32, %c0_i32_0 : i32, i32
  }
  func.func @transform_2(%arg0: i32) -> (i32, i32) {
    %c0_i32 = arith.constant 0 : i32
    %c0_i32_0 = arith.constant 0 : i32
    %c0_i32_1 = arith.constant 0 : i32
    return %c0_i32, %c0_i32_0 : i32, i32
  }
  func.func @transform_3(%arg0: i32) -> (i32, i32) {
    %c0_i32 = arith.constant 0 : i32
    %c0_i32_0 = arith.constant 0 : i32
    %c0_i32_1 = arith.constant 0 : i32
    return %c0_i32, %c0_i32_0 : i32, i32
  }
  func.func @transform_4(%arg0: i32) -> (i32, i32, i32) {
    %c0_i32 = arith.constant 0 : i32
    %c0_i32_0 = arith.constant 0 : i32
    %c0_i32_1 = arith.constant 0 : i32
    return %arg0, %c0_i32, %c0_i32_0 : i32, i32, i32
  }
}

</mosaic_0001>

<llo_original>
// kernel: tpu_custom_call.1
$region0: #{tpu_custom_call.1}
  #allocation0 [shape = 'u32[]', space=smem, size = 0x4, offset = 0x4, fixed_abs, tag = 'smem constant byte address 0x4 - core index']
  #allocation1 [shape = 'u32[72,128]{1,0:T(1,128)}', space=vmem, size = 0x9000, scoped, tag = 'internal scratch']
  %s0 = inlined_call_operand.hbm [shape: f32[2,8,256], index: 0, kind: input, shape index: {}]
  %s1 = inlined_call_operand.hbm [shape: f32[9,256], index: 1, kind: input, shape index: {}]
  %s2 = inlined_call_operand.vmem [shape: f32[8,87], index: 2, kind: input, shape index: {}]
  %s3 = inlined_call_operand.vmem [shape: bf16[24,8], index: 3, kind: input, shape index: {}]
  %s4 = inlined_call_operand.hbm [shape: f32[2,8,256], index: 4, kind: output, shape index: {}]
  %s5 = sld [smem:[#allocation0]]
  $region57: #{tpu_custom_call.1} parent=0
    _
  %s7 = ssub.s32 1, %s5
  %s8 = scalar_select 0, %s7, %s5
  $region1: #{tpu_custom_call.1} parent=0
    #allocation2 [shape = 'u8[16384]{0}', space=vmem, size = 0x4000, scoped, tag = 'input window, operand 0']
    #allocation3 [shape = 's32[2]{0}', space=sflag, size = 0x8, scoped, tag = 'scoped memory for tpu_custom_call.1']
    #allocation4 [shape = 's32[2]{0}', space=sflag, size = 0x8, scoped, tag = 'scoped memory for tpu_custom_call.1']
    #allocation5 [shape = 'u8[16384]{0}', space=vmem, size = 0x4000, scoped, tag = 'input window, operand 1, single buffered']
    #allocation6 [shape = 's32[1]{0}', space=sflag, size = 0x4, scoped, tag = 'scoped memory for tpu_custom_call.1']
    #allocation7 [shape = 'u8[16384]{0}', space=vmem, size = 0x4000, scoped, tag = 'output window, operand 0']
    %9 = vsyncpa [#allocation3], 0
    %s10 = scalar_lea.sflag [#allocation3], 1
    %11 = vsyncpa %s10, 0
    %12 = vsyncpa [#allocation6], 0
    %13 = vsyncpa [#allocation4], 0
    %s14 = scalar_lea.sflag [#allocation4], 1
    %15 = vsyncpa %s14, 0
    loop: start=0, step=1, limit=4
    $region2: #{tpu_custom_call.1} parent=1 // loop_pre_header
      _
    $region3: #{tpu_custom_call.1} parent=1 // loop_header
      %s17 = sphi 0, %s21
      %p18 = scmp.ge.s32.totalorder %s17, 4
      %s27 = sphi 0, %s29
      %s30 = sphi 0, %s27
      %s31 = sphi 0, %s30
      %s47 = sphi 0, %s31
      %s51 = sphi 0, %s51
      %s53 = sphi 0, %s51
      %s54 = sphi 0, %s53
      %s68 = sphi 0, %s54
      %s72 = sphi 0, %s72
      %s74 = sphi 0, %s72
      %s75 = sphi 0, %s74
      %s89 = sphi 0, %s75
      %s93 = sphi 0, %s93
      %s95 = sphi 0, %s93
      %s96 = sphi 0, %s95
      %s110 = sphi 0, %s96
      %s116 = sphi 0, %s118
      %s119 = sphi 0, %s116
      %s120 = sphi 0, %s119
      %s136 = sphi 0, %s120
    $region4: #{tpu_custom_call.1} parent=1 // loop_header_branch
      %20 = sbr.rel (%p18) target = $region8
    $region5: #{tpu_custom_call.1} parent=1 // loop_body
      %s22 = ssub.s32 %s17, 1
      %s23 = ssub.s32 %s17, 2
      %s24 = sadd.s32 %s17, 1
      %s25 = ssub.s32 %s17, %s24
      %p26 = scmp.eq.s32.totalorder %s25, 0
      %s28 = sadd.s32 %s27, 1
      %s29 = scalar_select %p26, %s27, %s28
      %p32 = pneg %p26
      %p33 = scmp.eq.s32.totalorder %s17, 1
      %p34 = por %p32, %p33
      %p35 = scmp.ne.s32.totalorder %s27, %s30
      %p36 = scmp.eq.s32.totalorder %s17, 0
      %p37 = por %p35, %p36
      %p38 = scmp.ne.s32.totalorder %s27, %s30
      %p39 = scmp.eq.s32.totalorder %s22, 1
      %p40 = por %p38, %p39
      %p41 = scmp.ne.s32.totalorder %s30, %s31
      %p42 = scmp.eq.s32.totalorder %s22, 0
      %p43 = por %p41, %p42
      %p44 = scmp.ne.s32.totalorder %s30, %s31
      %p45 = scmp.eq.s32.totalorder %s23, 1
      %p46 = por %p44, %p45
      %p48 = scmp.ne.s32.totalorder %s31, %s47
      %p49 = scmp.eq.s32.totalorder %s23, 0
      %p50 = por %p48, %p49
      %s52 = sadd.s32 %s51, 1
      %p55 = scmp.eq.s32.totalorder %s17, 1
      %p56 = scmp.ne.s32.totalorder %s51, %s53
      %p57 = scmp.eq.s32.totalorder %s17, 0
      %p58 = por %p56, %p57
      %p59 = scmp.ne.s32.totalorder %s51, %s53
      %p60 = scmp.eq.s32.totalorder %s22, 1
      %p61 = por %p59, %p60
      %p62 = scmp.ne.s32.totalorder %s53, %s54
      %p63 = scmp.eq.s32.totalorder %s22, 0
      %p64 = por %p62, %p63
      %p65 = scmp.ne.s32.totalorder %s53, %s54
      %p66 = scmp.eq.s32.totalorder %s23, 1
      %p67 = por %p65, %p66
      %p69 = scmp.ne.s32.totalorder %s54, %s68
      %p70 = scmp.eq.s32.totalorder %s23, 0
      %p71 = por %p69, %p70
      %s73 = sadd.s32 %s72, 1
      %p76 = scmp.eq.s32.totalorder %s17, 1
      %p77 = scmp.ne.s32.totalorder %s72, %s74
      %p78 = scmp.eq.s32.totalorder %s17, 0
      %p79 = por %p77, %p78
      %p80 = scmp.ne.s32.totalorder %s72, %s74
      %p81 = scmp.eq.s32.totalorder %s22, 1
      %p82 = por %p80, %p81
      %p83 = scmp.ne.s32.totalorder %s74, %s75
      %p84 = scmp.eq.s32.totalorder %s22, 0
      %p85 = por %p83, %p84
      %p86 = scmp.ne.s32.totalorder %s74, %s75
      %p87 = scmp.eq.s32.totalorder %s23, 1
      %p88 = por %p86, %p87
      %p90 = scmp.ne.s32.totalorder %s75, %s89
      %p91 = scmp.eq.s32.totalorder %s23, 0
      %p92 = por %p90, %p91
      %s94 = sadd.s32 %s93, 1
      %p97 = scmp.eq.s32.totalorder %s17, 1
      %p98 = scmp.ne.s32.totalorder %s93, %s95
      %p99 = scmp.eq.s32.totalorder %s17, 0
      %p100 = por %p98, %p99
      %p101 = scmp.ne.s32.totalorder %s93, %s95
      %p102 = scmp.eq.s32.totalorder %s22, 1
      %p103 = por %p101, %p102
      %p104 = scmp.ne.s32.totalorder %s95, %s96
      %p105 = scmp.eq.s32.totalorder %s22, 0
      %p106 = por %p104, %p105
      %p107 = scmp.ne.s32.totalorder %s95, %s96
      %p108 = scmp.eq.s32.totalorder %s23, 1
      %p109 = por %p107, %p108
      %p111 = scmp.ne.s32.totalorder %s96, %s110
      %p112 = scmp.eq.s32.totalorder %s23, 0
      %p113 = por %p111, %p112
      %s114 = ssub.s32 %s17, %s24
      %p115 = scmp.eq.s32.totalorder %s114, 0
      %s117 = sadd.s32 %s116, 1
      %s118 = scalar_select %p115, %s116, %s117
      %p121 = pneg %p115
      %p122 = scmp.eq.s32.totalorder %s17, 1
      %p123 = por %p121, %p122
      %p124 = scmp.ne.s32.totalorder %s116, %s119
      %p125 = scmp.eq.s32.totalorder %s17, 0
      %p126 = por %p124, %p125
      %p127 = scmp.ne.s32.totalorder %s116, %s119
      %p128 = scmp.eq.s32.totalorder %s22, 1
      %p129 = por %p127, %p128
      %p130 = scmp.ne.s32.totalorder %s119, %s120
      %p131 = scmp.eq.s32.totalorder %s22, 0
      %p132 = por %p130, %p131
      %p133 = scmp.ne.s32.totalorder %s119, %s120
      %p134 = scmp.eq.s32.totalorder %s23, 1
      %p135 = por %p133, %p134
      %p137 = scmp.ne.s32.totalorder %s120, %s136
      %p138 = scmp.eq.s32.totalorder %s23, 0
      %p139 = por %p137, %p138
      %p140 = scmp.le.s32.totalorder 1, %s17
      %p141 = scmp.lt.s32.totalorder %s17, 3
      %p142 = pnand %p140, %p141
      %p143 = pneg %p142
      // Predicated region
      $region9: #{tpu_custom_call.1} parent=5 // pred_check
        _
      $region10: #{tpu_custom_call.1} parent=5 // pred_check_branch
        %145 = sbr.rel (%p142) target = $region12
      $region11: #{tpu_custom_call.1} parent=5 // pred_region
        %s146 = ssub.s32 %s17, 1
        // Predicated region
        $region13: #{tpu_custom_call.1} parent=11 // pred_check
          %p147 = pneg %p64
        $region14: #{tpu_custom_call.1} parent=11 // pred_check_branch
          %149 = sbr.rel (%p147) target = $region16
        $region15: #{tpu_custom_call.1} parent=11 // pred_region
          %151 = vsyncadd [#allocation6], 0
          %s152 = sshll.u32 %s1, 4
          %s153 = int_to_ptr.hbm [resolvable:$true] %s152
          %s154 = sshll.u32 [#allocation5], 4
          %s155 = int_to_ptr.vmem [resolvable:$true] %s154
          %160 = dma.hbm_to_vmem [thread:$0]  %s153, 512, %s155, [#allocation6], 256, 256, 16
        $region16: #{tpu_custom_call.1} parent=11 // pred_fallthru
          _
        // Predicated region
        $region17: #{tpu_custom_call.1} parent=11 // pred_check
          %p161 = pneg %p85
        $region18: #{tpu_custom_call.1} parent=11 // pred_check_branch
          %163 = sbr.rel (%p161) target = $region20
        $region19: #{tpu_custom_call.1} parent=11 // pred_region
          _
        $region20: #{tpu_custom_call.1} parent=11 // pred_fallthru
          _
        // Predicated region
        $region21: #{tpu_custom_call.1} parent=11 // pred_check
          %p164 = pneg %p106
        $region22: #{tpu_custom_call.1} parent=11 // pred_check_branch
          %166 = sbr.rel (%p164) target = $region24
        $region23: #{tpu_custom_call.1} parent=11 // pred_region
          _
        $region24: #{tpu_custom_call.1} parent=11 // pred_fallthru
          _
      $region12: #{tpu_custom_call.1} parent=5 // pred_fallthru
        _
      %p167 = scmp.lt.s32.totalorder %s17, 2
      // Predicated region
      $region25: #{tpu_custom_call.1} parent=5 // pred_check
        %p168 = pneg %p167
      $region26: #{tpu_custom_call.1} parent=5 // pred_check_branch
        %170 = sbr.rel (%p168) target = $region28
      $region27: #{tpu_custom_call.1} parent=5 // pred_region
        // Predicated region
        $region29: #{tpu_custom_call.1} parent=27 // pred_check
          %p171 = pneg %p37
        $region30: #{tpu_custom_call.1} parent=27 // pred_check_branch
          %173 = sbr.rel (%p171) target = $region32
        $region31: #{tpu_custom_call.1} parent=27 // pred_region
          %s174 = sand.u32 %s27, 1
          %s175 = scalar_lea.sflag [#allocation3], %s174
          %s176 = sand.u32 %s27, 1
          %s177 = smul.addr %s176, 16
          %s178 = scalar_lea.vmem [#allocation2], %s177
          %180 = vsyncadd %s175, 0
          %s181 = smul.addr %s17, 2
          %s182 = smul.addr %s181, 8
          %s183 = scalar_lea.hbm %s0, %s182
          %s185 = sshll.u32 %s183, 4
          %s186 = int_to_ptr.hbm [resolvable:$true] %s185
          %s187 = sshll.u32 %s178, 4
          %s188 = int_to_ptr.vmem [resolvable:$true] %s187
          %190 = dma.hbm_to_vmem [thread:$0]  %s186, 256, %s188, %s175
        $region32: #{tpu_custom_call.1} parent=27 // pred_fallthru
          _
      $region28: #{tpu_custom_call.1} parent=5 // pred_fallthru
        _
      %p191 = scmp.le.s32.totalorder 1, %s17
      %p192 = scmp.lt.s32.totalorder %s17, 3
      %p193 = pnand %p191, %p192
      %p194 = pneg %p193
      // Predicated region
      $region33: #{tpu_custom_call.1} parent=5 // pred_check
        _
      $region34: #{tpu_custom_call.1} parent=5 // pred_check_branch
        %196 = sbr.rel (%p193) target = $region36
      $region35: #{tpu_custom_call.1} parent=5 // pred_region
        %s197 = ssub.s32 %s17, 1
        %s198 = sand.u32 %s30, 1
        %s199 = scalar_lea.sflag [#allocation3], %s198
        %s200 = sand.u32 %s30, 1
        %s201 = smul.addr %s200, 16
        %s202 = scalar_lea.vmem [#allocation2], %s201
        // Predicated region
        $region37: #{tpu_custom_call.1} parent=35 // pred_check
          %p203 = pneg %p43
        $region38: #{tpu_custom_call.1} parent=35 // pred_check_branch
          %205 = sbr.rel (%p203) target = $region40
        $region39: #{tpu_custom_call.1} parent=35 // pred_region
          %207 = dma.done %s199, 256
        $region40: #{tpu_custom_call.1} parent=35 // pred_fallthru
          _
        // Predicated region
        $region41: #{tpu_custom_call.1} parent=35 // pred_check
          %p208 = pneg %p64
        $region42: #{tpu_custom_call.1} parent=35 // pred_check_branch
          %210 = sbr.rel (%p208) target = $region44
        $region43: #{tpu_custom_call.1} parent=35 // pred_region
          %212 = dma.done [#allocation6], 512
        $region44: #{tpu_custom_call.1} parent=35 // pred_fallthru
          _
        %s213 = sand.u32 %s30, 1
        %s214 = scalar_lea.sflag [#allocation3], %s213
        %s215 = sand.u32 %s30, 1
        %s216 = smul.addr %s215, 16
        %s217 = scalar_lea.vmem [#allocation2], %s216
        %p218 = pneg %p43
        %p219 = pneg %p40
        %p220 = pneg %p64
        %p221 = pneg %p61
        %p222 = pneg %p85
        %p223 = pneg %p82
        %p224 = pneg %p106
        %p225 = pneg %p103
        %p226 = pneg %p132
        %p227 = pneg %p129
        %s228 = sand.u32 %s119, 1
        %s229 = scalar_lea.sflag [#allocation4], %s228
        %s230 = sand.u32 %s119, 1
        %s231 = smul.addr %s230, 16
        %s232 = scalar_lea.vmem [#allocation7], %s231
        %v234 = vld [vmem:[%s202] sm:$0xff]
        %v235 = vld [vmem:[%s202 + $0x8] sm:$0xff]
        %236 = vrot.lane.b32.xlu0 %v234, 17
        %v237 = vpop.permute.xlu0 %236
        %238 = vrot.lane.b32.xlu0 %v235, 17
        %v239 = vpop.permute.xlu0 %238
        %v240 = vlaneseq
        %v241 = vand.u32 %v240, 127
        %vm242 = vcmp.lt.s32.totalorder %v241, 17
        %v243 = vsel %vm242, %v237, %v239
        %v244 = vsel %vm242, %v239, %v237
        %v245 = vld [vmem:[#allocation5] ss:$8 sm:$0x3]
        %v247 = vperm.slane %v245, 0
        %v248 = vperm.slane %v245, 1
        %v251 = vmul.f32 %v244, %v247
        %v252 = vmul.f32 %v243, %v248
        %253 = vrot.lane.b32.xlu0 %v234, 16
        %v254 = vpop.permute.xlu0 %253
        %255 = vrot.lane.b32.xlu0 %v235, 16
        %v256 = vpop.permute.xlu0 %255
        %vm257 = vcmp.lt.s32.totalorder %v241, 16
        %v258 = vsel %vm257, %v254, %v256
        %v259 = vsel %vm257, %v256, %v254
        %s260 = scalar_lea.vmem [#allocation5], 1
        %v261 = vld [vmem:[%s260] ss:$8 sm:$0x3]
        %v263 = vperm.slane %v261, 0
        %v264 = vperm.slane %v261, 1
        %v267 = vmul.f32 %v259, %v263
        %v268 = vmul.f32 %v258, %v264
        %269 = vrot.lane.b32.xlu0 %v234, 15
        %v270 = vpop.permute.xlu0 %269
        %271 = vrot.lane.b32.xlu0 %v235, 15
        %v272 = vpop.permute.xlu0 %271
        %vm273 = vcmp.lt.s32.totalorder %v241, 15
        %v274 = vsel %vm273, %v270, %v272
        %v275 = vsel %vm273, %v272, %v270
        %s276 = scalar_lea.vmem [#allocation5], 2
        %v277 = vld [vmem:[%s276] ss:$8 sm:$0x3]
        %v279 = vperm.slane %v277, 0
        %v280 = vperm.slane %v277, 1
        %v283 = vmul.f32 %v275, %v279
        %v284 = vmul.f32 %v274, %v280
        %285 = vrot.lane.b32.xlu0 %v234, 1
        %v286 = vpop.permute.xlu0 %285
        %287 = vrot.lane.b32.xlu0 %v235, 1
        %v288 = vpop.permute.xlu0 %287
        %vm289 = vcmp.lt.s32.totalorder %v241, 1
        %v290 = vsel %vm289, %v286, %v288
        %v291 = vsel %vm289, %v288, %v286
        %s292 = scalar_lea.vmem [#allocation5], 3
        %v293 = vld [vmem:[%s292] ss:$8 sm:$0x3]
        %v295 = vperm.slane %v293, 0
        %v296 = vperm.slane %v293, 1
        %v299 = vmul.f32 %v291, %v295
        %v300 = vmul.f32 %v290, %v296
        %301 = vrot.lane.b32.xlu0 %v234, 127
        %v302 = vpop.permute.xlu0 %301
        %303 = vrot.lane.b32.xlu0 %v235, 127
        %v304 = vpop.permute.xlu0 %303
        %vm305 = vcmp.lt.s32.totalorder %v241, 127
        %v306 = vsel %vm305, %v302, %v304
        %v307 = vsel %vm305, %v304, %v302
        %s308 = scalar_lea.vmem [#allocation5], 5
        %v309 = vld [vmem:[%s308] ss:$8 sm:$0x3]
        %v311 = vperm.slane %v309, 0
        %v312 = vperm.slane %v309, 1
        %v315 = vmul.f32 %v306, %v311
        %v316 = vmul.f32 %v307, %v312
        %317 = vrot.lane.b32.xlu0 %v234, 113
        %v318 = vpop.permute.xlu0 %317
        %319 = vrot.lane.b32.xlu0 %v235, 113
        %v320 = vpop.permute.xlu0 %319
        %vm321 = vcmp.lt.s32.totalorder %v241, 113
        %v322 = vsel %vm321, %v318, %v320
        %v323 = vsel %vm321, %v320, %v318
        %s324 = scalar_lea.vmem [#allocation5], 6
        %v325 = vld [vmem:[%s324] ss:$8 sm:$0x3]
        %v327 = vperm.slane %v325, 0
        %v328 = vperm.slane %v325, 1
        %v331 = vmul.f32 %v322, %v327
        %v332 = vmul.f32 %v323, %v328
        %333 = vrot.lane.b32.xlu0 %v234, 112
        %v334 = vpop.permute.xlu0 %333
        %335 = vrot.lane.b32.xlu0 %v235, 112
        %v336 = vpop.permute.xlu0 %335
        %vm337 = vcmp.lt.s32.totalorder %v241, 112
        %v338 = vsel %vm337, %v334, %v336
        %v339 = vsel %vm337, %v336, %v334
        %s340 = scalar_lea.vmem [#allocation5], 7
        %v341 = vld [vmem:[%s340] ss:$8 sm:$0x3]
        %v343 = vperm.slane %v341, 0
        %v344 = vperm.slane %v341, 1
        %v347 = vmul.f32 %v338, %v343
        %v348 = vmul.f32 %v339, %v344
        %349 = vrot.lane.b32.xlu0 %v234, 111
        %v350 = vpop.permute.xlu0 %349
        %351 = vrot.lane.b32.xlu0 %v235, 111
        %v352 = vpop.permute.xlu0 %351
        %vm353 = vcmp.lt.s32.totalorder %v241, 111
        %v354 = vsel %vm353, %v350, %v352
        %v355 = vsel %vm353, %v352, %v350
        %s356 = scalar_lea.vmem [#allocation5], 16
        %v357 = vld [vmem:[%s356] ss:$8 sm:$0x3]
        %v359 = vperm.slane %v357, 0
        %v360 = vperm.slane %v357, 1
        %v363 = vmul.f32 %v354, %v359
        %v364 = vmul.f32 %v355, %v360
        %v365 = vld [vmem:[%s2] sm:$0xff]
        %vm366 = vcmask 588800
        %v368 = vsel %vm366, %v365, 0
        %370 = vmatpush.msra.mxu0 0.0
        %371 = vmatpush.msra.mxu0 0.0
        %372 = vmatpush.msra.mxu0 0.0
        %373 = vmatpush.msra.mxu0 0.0
        %374 = vmatpush.msra.mxu0 0.0
        %375 = vmatpush.msra.mxu0 0.0
        %376 = vmatpush.msra.mxu0 0.0
        %377 = vmatpush.msra.mxu0 %v363
        %378 = vmatpush.msra.mxu0 %v347
        %379 = vmatpush.msra.mxu0 %v331
        %380 = vmatpush.msra.mxu0 %v315
        %381 = vmatpush.msra.mxu0 %v234
        %382 = vmatpush.msra.mxu0 %v299
        %383 = vmatpush.msra.mxu0 %v283
        %384 = vmatpush.msra.mxu0 %v267
        %385 = vmatpush.msra.mxu0 %v251
        %386 = vmatmul.f32.gmra.mxu0 %v368
        %v387 = vpop.f32.mrf.mxu0
        %v388 = vadd.f32 0.0, %v387
        %389 = vdwg.mxu0
        %390 = vmatpush.msra.mxu0 0.0
        %391 = vmatpush.msra.mxu0 0.0
        %392 = vmatpush.msra.mxu0 0.0
        %393 = vmatpush.msra.mxu0 0.0
        %394 = vmatpush.msra.mxu0 0.0
        %395 = vmatpush.msra.mxu0 0.0
        %396 = vmatpush.msra.mxu0 0.0
        %397 = vmatpush.msra.mxu0 %v364
        %398 = vmatpush.msra.mxu0 %v348
        %399 = vmatpush.msra.mxu0 %v332
        %400 = vmatpush.msra.mxu0 %v316
        %401 = vmatpush.msra.mxu0 %v235
        %402 = vmatpush.msra.mxu0 %v300
        %403 = vmatpush.msra.mxu0 %v284
        %404 = vmatpush.msra.mxu0 %v268
        %405 = vmatpush.msra.mxu0 %v252
        %406 = vmatmul.f32.gmra.mxu0 %v368
        %v407 = vpop.f32.mrf.mxu0
        %v408 = vadd.f32 0.0, %v407
        %409 = vdwg.mxu0
        %410 = vset.pattern.permute.xlu0 80
        %411 = vperm.xlu0 %410, %v365
        %v412 = vpop.permute.xlu0 %411
        %v414 = vmul.f32 %v388, %v412
        %v415 = vmul.f32 %v408, %v412
        %416 = vset.pattern.permute.xlu0 81
        %417 = vperm.xlu0 %416, %v365
        %v418 = vpop.permute.xlu0 %417
        %v420 = vadd.f32 %v414, %v418
        %v421 = vadd.f32 %v415, %v418
        %v422 = vmax.f32 %v420, 0.0
        %v423 = vmax.f32 %v421, 0.0
        %v424 = vrot.slane %v422, 4
        %v425 = vadd.f32 %v422, %v424
        %v426 = vrot.slane %v425, 2
        %v427 = vadd.f32 %v425, %v426
        %v428 = vrot.slane %v427, 1
        %v429 = vadd.f32 %v427, %v428
        %v430 = vrot.slane %v423, 4
        %v431 = vadd.f32 %v423, %v430
        %v432 = vrot.slane %v431, 2
        %v433 = vadd.f32 %v431, %v432
        %v434 = vrot.slane %v433, 1
        %v435 = vadd.f32 %v433, %v434
        %v436 = vrcp.pop 8.0
        %v437 = vmul.f32 8.0, %v436
        %v438 = vsub.f32 1.0, %v437
        %v439 = vmul.f32 %v436, %v438
        %v440 = vadd.f32 %v436, %v439
        %vm441 = vweird.f32 %v436
        %v442 = vsel %vm441, %v436, %v440
        %v443 = vmul.f32 %v429, %v442
        %v444 = vmul.f32 %v435, %v442
        %v445 = vsub.f32 %v422, %v443
        %v446 = vsub.f32 %v423, %v444
        %v447 = vmul.f32 %v445, %v445
        %v448 = vmul.f32 %v446, %v446
        %v449 = vrot.slane %v447, 4
        %v450 = vadd.f32 %v447, %v449
        %v451 = vrot.slane %v450, 2
        %v452 = vadd.f32 %v450, %v451
        %v453 = vrot.slane %v452, 1
        %v454 = vadd.f32 %v452, %v453
        %v455 = vrot.slane %v448, 4
        %v456 = vadd.f32 %v448, %v455
        %v457 = vrot.slane %v456, 2
        %v458 = vadd.f32 %v456, %v457
        %v459 = vrot.slane %v458, 1
        %v460 = vadd.f32 %v458, %v459
        %v461 = vmul.f32 %v454, %v442
        %v462 = vmul.f32 %v460, %v442
        %v463 = vadd.f32 %v461, 1e-05
        %v464 = vadd.f32 %v462, 1e-05
        %v465 = vrsqrt.pop %v463
        %v466 = vmul.f32 %v465, %v463
        %v467 = vmul.f32 %v466, %v465
        %v468 = vmul.f32 0.5, %v467
        %v469 = vsub.f32 1.5, %v468
        %v470 = vmul.f32 %v465, %v469
        %vm471 = vweird.f32 %v463
        %vm472 = vweird.f32 %v465
        %vm473 = vmor %vm471, %vm472
        %v474 = vsel %vm473, %v465, %v470
        %v475 = vrsqrt.pop %v464
        %v476 = vmul.f32 %v475, %v464
        %v477 = vmul.f32 %v476, %v475
        %v478 = vmul.f32 0.5, %v477
        %v479 = vsub.f32 1.5, %v478
        %v480 = vmul.f32 %v475, %v479
        %vm481 = vweird.f32 %v464
        %vm482 = vweird.f32 %v475
        %vm483 = vmor %vm481, %vm482
        %v484 = vsel %vm483, %v475, %v480
        %v485 = vmul.f32 %v445, %v474
        %v486 = vmul.f32 %v446, %v484
        %487 = vset.pattern.permute.xlu0 82
        %488 = vperm.xlu0 %487, %v365
        %v489 = vpop.permute.xlu0 %488
        %v491 = vmul.f32 %v485, %v489
        %v492 = vmul.f32 %v486, %v489
        %493 = vset.pattern.permute.xlu0 83
        %494 = vperm.xlu0 %493, %v365
        %v495 = vpop.permute.xlu0 %494
        %v497 = vadd.f32 %v491, %v495
        %v498 = vadd.f32 %v492, %v495
        %v499 = vld [vmem:[%s3] sm:$0xf]
        %v500 = vld [vmem:[%s3 + $0x4] sm:$0xf]
        %v501 = vld [vmem:[%s3 + $0x8] sm:$0xf]
        %v502 = vpack.c.bf16 %v497, %v497
        %v503 = vpack.c.bf16 %v498, %v498
        %v507 = vunpack.c.l.b16 %v499
        %v508 = vunpack.c.l.b16 %v500
        %v509 = vunpack.c.l.b16 %v501
        %v510 = vpack.c.b16 %v508, %v507
        %v511 = vpack.c.b16 %v509, %v509
        %vm512 = vcmask 64512
        %v514 = vsel %vm512, %v510, 0
        %v517 = vsel %vm512, %v511, 0
        %vm519 = vcmask 1043456
        %v521 = vsel %vm519, %v502, 0
        %v524 = vsel %vm519, %v503, 0
        %526 = vmatpush.bf16.msra.mxu0 0
        %527 = vmatpush.bf16.msra.mxu0 0
        %528 = vmatpush.bf16.msra.mxu0 0
        %529 = vmatpush.bf16.msra.mxu0 0
        %530 = vmatpush.bf16.msra.mxu0 0
        %531 = vmatpush.bf16.msra.mxu0 0
        %532 = vmatpush.bf16.msra.mxu0 0
        %533 = vmatpush.bf16.msra.mxu0 %v521
        %534 = vmatmul.bf16.gmra.mxu0 %v514
        %v535 = vpop.f32.mrf.mxu0
        %v536 = vadd.f32 0.0, %v535
        %v537 = vpop.f32.mrf.mxu0
        %v538 = vadd.f32 0.0, %v537
        %539 = vmatmul.bf16.gmra.mxu0 %v517
        %v540 = vpop.f32.mrf.mxu0
        %v541 = vadd.f32 0.0, %v540
        %v542 = vpop.f32.mrf.mxu0
        %543 = vdwg.mxu0
        %544 = vmatpush.bf16.msra.mxu0 0
        %545 = vmatpush.bf16.msra.mxu0 0
        %546 = vmatpush.bf16.msra.mxu0 0
        %547 = vmatpush.bf16.msra.mxu0 0
        %548 = vmatpush.bf16.msra.mxu0 0
        %549 = vmatpush.bf16.msra.mxu0 0
        %550 = vmatpush.bf16.msra.mxu0 0
        %551 = vmatpush.bf16.msra.mxu0 %v524
        %552 = vmatmul.bf16.gmra.mxu0 %v514
        %v553 = vpop.f32.mrf.mxu0
        %v554 = vadd.f32 0.0, %v553
        %v555 = vpop.f32.mrf.mxu0
        %v556 = vadd.f32 0.0, %v555
        %557 = vmatmul.bf16.gmra.mxu0 %v517
        %v558 = vpop.f32.mrf.mxu0
        %v559 = vadd.f32 0.0, %v558
        %v560 = vpop.f32.mrf.mxu0
        %561 = vdwg.mxu0
        %562 = vset.pattern.permute.xlu0 85
        %563 = vperm.xlu0 %562, %v365
        %v564 = vpop.permute.xlu0 %563
        %v566 = vadd.f32 %v536, %v564
        %v567 = vadd.f32 %v554, %v564
        %568 = vset.pattern.permute.xlu0 86
        %569 = vperm.xlu0 %568, %v365
        %v570 = vpop.permute.xlu0 %569
        %v572 = vadd.f32 %v541, %v570
        %v573 = vadd.f32 %v559, %v570
        %574 = vxpose.xlu0.b32.start [1/16] %v538, 128
        %575 = vxpose.xlu0.b32.cont [2/16] 0.0, 128
        %576 = vxpose.xlu0.b32.cont [3/16] 0.0, 128
        %577 = vxpose.xlu0.b32.cont [4/16] 0.0, 128
        %578 = vxpose.xlu0.b32.cont [5/16] 0.0, 128
        %579 = vxpose.xlu0.b32.cont [6/16] 0.0, 128
        %580 = vxpose.xlu0.b32.cont [7/16] 0.0, 128
        %581 = vxpose.xlu0.b32.cont [8/16] 0.0, 128
        %582 = vxpose.xlu0.b32.cont [9/16] 0.0, 128
        %583 = vxpose.xlu0.b32.cont [10/16] 0.0, 128
        %584 = vxpose.xlu0.b32.cont [11/16] 0.0, 128
        %585 = vxpose.xlu0.b32.cont [12/16] 0.0, 128
        %586 = vxpose.xlu0.b32.cont [13/16] 0.0, 128
        %587 = vxpose.xlu0.b32.cont [14/16] 0.0, 128
        %588 = vxpose.xlu0.b32.cont [15/16] 0.0, 128
        %589 = vxpose.xlu0.b32.end [16/16] 0.0, 128
        %v590 = vpop.trf.xlu0
        %v591 = vpop.trf.xlu0
        %v592 = vpop.trf.xlu0
        %v593 = vpop.trf.xlu0
        %v594 = vpop.trf.xlu0
        %v595 = vpop.trf.xlu0
        %v596 = vpop.trf.xlu0
        %v597 = vpop.trf.xlu0
        %v598 = vpop.trf.xlu0
        %v599 = vpop.trf.xlu0
        %v600 = vpop.trf.xlu0
        %v601 = vpop.trf.xlu0
        %v602 = vpop.trf.xlu0
        %v603 = vpop.trf.xlu0
        %v604 = vpop.trf.xlu0
        %v605 = vpop.trf.xlu0
        %606 = vxpose.xlu0.b32.start [1/16] %v556, 128
        %607 = vxpose.xlu0.b32.cont [2/16] 0.0, 128
        %608 = vxpose.xlu0.b32.cont [3/16] 0.0, 128
        %609 = vxpose.xlu0.b32.cont [4/16] 0.0, 128
        %610 = vxpose.xlu0.b32.cont [5/16] 0.0, 128
        %611 = vxpose.xlu0.b32.cont [6/16] 0.0, 128
        %612 = vxpose.xlu0.b32.cont [7/16] 0.0, 128
        %613 = vxpose.xlu0.b32.cont [8/16] 0.0, 128
        %614 = vxpose.xlu0.b32.cont [9/16] 0.0, 128
        %615 = vxpose.xlu0.b32.cont [10/16] 0.0, 128
        %616 = vxpose.xlu0.b32.cont [11/16] 0.0, 128
        %617 = vxpose.xlu0.b32.cont [12/16] 0.0, 128
        %618 = vxpose.xlu0.b32.cont [13/16] 0.0, 128
        %619 = vxpose.xlu0.b32.cont [14/16] 0.0, 128
        %620 = vxpose.xlu0.b32.cont [15/16] 0.0, 128
        %621 = vxpose.xlu0.b32.end [16/16] 0.0, 128
        %v622 = vpop.trf.xlu0
        %v623 = vpop.trf.xlu0
        %v624 = vpop.trf.xlu0
        %v625 = vpop.trf.xlu0
        %v626 = vpop.trf.xlu0
        %v627 = vpop.trf.xlu0
        %v628 = vpop.trf.xlu0
        %v629 = vpop.trf.xlu0
        %v630 = vpop.trf.xlu0
        %v631 = vpop.trf.xlu0
        %v632 = vpop.trf.xlu0
        %v633 = vpop.trf.xlu0
        %v634 = vpop.trf.xlu0
        %v635 = vpop.trf.xlu0
        %v636 = vpop.trf.xlu0
        %v637 = vpop.trf.xlu0
        %v638 = vpack.c.bf16 %v566, %v566
        %v639 = vpack.c.bf16 %v567, %v567
        %v640 = vpack.c.bf16 %v591, %v590
        %v641 = vpack.c.bf16 %v593, %v592
        %v642 = vpack.c.bf16 %v595, %v594
        %v643 = vpack.c.bf16 %v597, %v596
        %v644 = vpack.c.bf16 %v599, %v598
        %v645 = vpack.c.bf16 %v601, %v600
        %v646 = vpack.c.bf16 %v603, %v602
        %v647 = vpack.c.bf16 %v605, %v604
        %v648 = vpack.c.bf16 %v623, %v622
        %v649 = vpack.c.bf16 %v625, %v624
        %v650 = vpack.c.bf16 %v627, %v626
        %v651 = vpack.c.bf16 %v629, %v628
        %v652 = vpack.c.bf16 %v631, %v630
        %v653 = vpack.c.bf16 %v633, %v632
        %v654 = vpack.c.bf16 %v635, %v634
        %v655 = vpack.c.bf16 %v637, %v636
        %v656 = vpack.c.bf16 %v572, %v572
        %v657 = vpack.c.bf16 %v573, %v573
        %vm658 = vcmask 31744
        %v660 = vsel %vm658, %v640, 0
        %v663 = vsel %vm658, %v641, 0
        %v666 = vsel %vm658, %v642, 0
        %v669 = vsel %vm658, %v643, 0
        %v672 = vsel %vm658, %v644, 0
        %v675 = vsel %vm658, %v645, 0
        %v678 = vsel %vm658, %v646, 0
        %v681 = vsel %vm658, %v647, 0
        %v684 = vsel %vm658, %v648, 0
        %v687 = vsel %vm658, %v649, 0
        %v690 = vsel %vm658, %v650, 0
        %v693 = vsel %vm658, %v651, 0
        %v696 = vsel %vm658, %v652, 0
        %v699 = vsel %vm658, %v653, 0
        %v702 = vsel %vm658, %v654, 0
        %v705 = vsel %vm658, %v655, 0
        %vm707 = vcmask 1041408
        %v709 = vsel %vm707, %v638, 0
        %v712 = vsel %vm707, %v639, 0
        %714 = vmatpush.bf16.msra.mxu0 0
        %715 = vmatpush.bf16.msra.mxu0 0
        %716 = vmatpush.bf16.msra.mxu0 0
        %717 = vmatpush.bf16.msra.mxu0 0
        %718 = vmatpush.bf16.msra.mxu0 0
        %719 = vmatpush.bf16.msra.mxu0 0
        %720 = vmatpush.bf16.msra.mxu0 0
        %721 = vmatpush.bf16.msra.mxu0 %v709
        %722 = vmatmul.bf16.gmra.mxu0 %v660
        %v723 = vpop.f32.mrf.mxu0
        %v724 = vadd.f32 0.0, %v723
        %v725 = vpop.f32.mrf.mxu0
        %v726 = vadd.f32 0.0, %v725
        %727 = vmatmul.bf16.gmra.mxu0 %v663
        %v728 = vpop.f32.mrf.mxu0
        %v729 = vadd.f32 0.0, %v728
        %v730 = vpop.f32.mrf.mxu0
        %v731 = vadd.f32 0.0, %v730
        %732 = vmatmul.bf16.gmra.mxu0 %v666
        %v733 = vpop.f32.mrf.mxu0
        %v734 = vadd.f32 0.0, %v733
        %v735 = vpop.f32.mrf.mxu0
        %v736 = vadd.f32 0.0, %v735
        %737 = vmatmul.bf16.gmra.mxu0 %v669
        %v738 = vpop.f32.mrf.mxu0
        %v739 = vadd.f32 0.0, %v738
        %v740 = vpop.f32.mrf.mxu0
        %v741 = vadd.f32 0.0, %v740
        %742 = vmatmul.bf16.gmra.mxu0 %v672
        %v743 = vpop.f32.mrf.mxu0
        %v744 = vadd.f32 0.0, %v743
        %v745 = vpop.f32.mrf.mxu0
        %v746 = vadd.f32 0.0, %v745
        %747 = vmatmul.bf16.gmra.mxu0 %v675
        %v748 = vpop.f32.mrf.mxu0
        %v749 = vadd.f32 0.0, %v748
        %v750 = vpop.f32.mrf.mxu0
        %v751 = vadd.f32 0.0, %v750
        %752 = vmatmul.bf16.gmra.mxu0 %v678
        %v753 = vpop.f32.mrf.mxu0
        %v754 = vadd.f32 0.0, %v753
        %v755 = vpop.f32.mrf.mxu0
        %v756 = vadd.f32 0.0, %v755
        %757 = vmatmul.bf16.gmra.mxu0 %v681
        %v758 = vpop.f32.mrf.mxu0
        %v759 = vadd.f32 0.0, %v758
        %v760 = vpop.f32.mrf.mxu0
        %v761 = vadd.f32 0.0, %v760
        %762 = vmatmul.bf16.gmra.mxu0 %v684
        %v763 = vpop.f32.mrf.mxu0
        %v764 = vadd.f32 0.0, %v763
        %v765 = vpop.f32.mrf.mxu0
        %v766 = vadd.f32 0.0, %v765
        %767 = vmatmul.bf16.gmra.mxu0 %v687
        %v768 = vpop.f32.mrf.mxu0
        %v769 = vadd.f32 0.0, %v768
        %v770 = vpop.f32.mrf.mxu0
        %v771 = vadd.f32 0.0, %v770
        %772 = vmatmul.bf16.gmra.mxu0 %v690
        %v773 = vpop.f32.mrf.mxu0
        %v774 = vadd.f32 0.0, %v773
        %v775 = vpop.f32.mrf.mxu0
        %v776 = vadd.f32 0.0, %v775
        %777 = vmatmul.bf16.gmra.mxu0 %v693
        %v778 = vpop.f32.mrf.mxu0
        %v779 = vadd.f32 0.0, %v778
        %v780 = vpop.f32.mrf.mxu0
        %v781 = vadd.f32 0.0, %v780
        %782 = vmatmul.bf16.gmra.mxu0 %v696
        %v783 = vpop.f32.mrf.mxu0
        %v784 = vadd.f32 0.0, %v783
        %v785 = vpop.f32.mrf.mxu0
        %v786 = vadd.f32 0.0, %v785
        %787 = vmatmul.bf16.gmra.mxu0 %v699
        %v788 = vpop.f32.mrf.mxu0
        %v789 = vadd.f32 0.0, %v788
        %v790 = vpop.f32.mrf.mxu0
        %v791 = vadd.f32 0.0, %v790
        %792 = vmatmul.bf16.gmra.mxu0 %v702
        %v793 = vpop.f32.mrf.mxu0
        %v794 = vadd.f32 0.0, %v793
        %v795 = vpop.f32.mrf.mxu0
        %v796 = vadd.f32 0.0, %v795
        %797 = vmatmul.bf16.gmra.mxu0 %v705
        %v798 = vpop.f32.mrf.mxu0
        %v799 = vadd.f32 0.0, %v798
        %v800 = vpop.f32.mrf.mxu0
        %v801 = vadd.f32 0.0, %v800
        %802 = vdwg.mxu0
        %803 = vmatpush.bf16.msra.mxu0 0
        %804 = vmatpush.bf16.msra.mxu0 0
        %805 = vmatpush.bf16.msra.mxu0 0
        %806 = vmatpush.bf16.msra.mxu0 0
        %807 = vmatpush.bf16.msra.mxu0 0
        %808 = vmatpush.bf16.msra.mxu0 0
        %809 = vmatpush.bf16.msra.mxu0 0
        %810 = vmatpush.bf16.msra.mxu0 %v712
        %811 = vmatmul.bf16.gmra.mxu0 %v660
        %v812 = vpop.f32.mrf.mxu0
        %v813 = vadd.f32 0.0, %v812
        %v814 = vpop.f32.mrf.mxu0
        %v815 = vadd.f32 0.0, %v814
        %816 = vmatmul.bf16.gmra.mxu0 %v663
        %v817 = vpop.f32.mrf.mxu0
        %v818 = vadd.f32 0.0, %v817
        %v819 = vpop.f32.mrf.mxu0
        %v820 = vadd.f32 0.0, %v819
        %821 = vmatmul.bf16.gmra.mxu0 %v666
        %v822 = vpop.f32.mrf.mxu0
        %v823 = vadd.f32 0.0, %v822
        %v824 = vpop.f32.mrf.mxu0
        %v825 = vadd.f32 0.0, %v824
        %826 = vmatmul.bf16.gmra.mxu0 %v669
        %v827 = vpop.f32.mrf.mxu0
        %v828 = vadd.f32 0.0, %v827
        %v829 = vpop.f32.mrf.mxu0
        %v830 = vadd.f32 0.0, %v829
        %831 = vmatmul.bf16.gmra.mxu0 %v672
        %v832 = vpop.f32.mrf.mxu0
        %v833 = vadd.f32 0.0, %v832
        %v834 = vpop.f32.mrf.mxu0
        %v835 = vadd.f32 0.0, %v834
        %836 = vmatmul.bf16.gmra.mxu0 %v675
        %v837 = vpop.f32.mrf.mxu0
        %v838 = vadd.f32 0.0, %v837
        %v839 = vpop.f32.mrf.mxu0
        %v840 = vadd.f32 0.0, %v839
        %841 = vmatmul.bf16.gmra.mxu0 %v678
        %v842 = vpop.f32.mrf.mxu0
        %v843 = vadd.f32 0.0, %v842
        %v844 = vpop.f32.mrf.mxu0
        %v845 = vadd.f32 0.0, %v844
        %846 = vmatmul.bf16.gmra.mxu0 %v681
        %v847 = vpop.f32.mrf.mxu0
        %v848 = vadd.f32 0.0, %v847
        %v849 = vpop.f32.mrf.mxu0
        %v850 = vadd.f32 0.0, %v849
        %851 = vmatmul.bf16.gmra.mxu0 %v684
        %v852 = vpop.f32.mrf.mxu0
        %v853 = vadd.f32 0.0, %v852
        %v854 = vpop.f32.mrf.mxu0
        %v855 = vadd.f32 0.0, %v854
        %856 = vmatmul.bf16.gmra.mxu0 %v687
        %v857 = vpop.f32.mrf.mxu0
        %v858 = vadd.f32 0.0, %v857
        %v859 = vpop.f32.mrf.mxu0
        %v860 = vadd.f32 0.0, %v859
        %861 = vmatmul.bf16.gmra.mxu0 %v690
        %v862 = vpop.f32.mrf.mxu0
        %v863 = vadd.f32 0.0, %v862
        %v864 = vpop.f32.mrf.mxu0
        %v865 = vadd.f32 0.0, %v864
        %866 = vmatmul.bf16.gmra.mxu0 %v693
        %v867 = vpop.f32.mrf.mxu0
        %v868 = vadd.f32 0.0, %v867
        %v869 = vpop.f32.mrf.mxu0
        %v870 = vadd.f32 0.0, %v869
        %871 = vmatmul.bf16.gmra.mxu0 %v696
        %v872 = vpop.f32.mrf.mxu0
        %v873 = vadd.f32 0.0, %v872
        %v874 = vpop.f32.mrf.mxu0
        %v875 = vadd.f32 0.0, %v874
        %876 = vmatmul.bf16.gmra.mxu0 %v699
        %v877 = vpop.f32.mrf.mxu0
        %v878 = vadd.f32 0.0, %v877
        %v879 = vpop.f32.mrf.mxu0
        %v880 = vadd.f32 0.0, %v879
        %881 = vmatmul.bf16.gmra.mxu0 %v702
        %v882 = vpop.f32.mrf.mxu0
        %v883 = vadd.f32 0.0, %v882
        %v884 = vpop.f32.mrf.mxu0
        %v885 = vadd.f32 0.0, %v884
        %886 = vmatmul.bf16.gmra.mxu0 %v705
        %v887 = vpop.f32.mrf.mxu0
        %v888 = vadd.f32 0.0, %v887
        %v889 = vpop.f32.mrf.mxu0
        %v890 = vadd.f32 0.0, %v889
        %891 = vdwg.mxu0
        %v892 = vmax.f32 %v724, %v729
        %v893 = vmax.f32 %v726, %v731
        %v894 = vmax.f32 %v892, %v734
        %v895 = vmax.f32 %v893, %v736
        %v896 = vmax.f32 %v894, %v739
        %v897 = vmax.f32 %v895, %v741
        %v898 = vmax.f32 %v896, %v744
        %v899 = vmax.f32 %v897, %v746
        %v900 = vmax.f32 %v898, %v749
        %v901 = vmax.f32 %v899, %v751
        %v902 = vmax.f32 %v900, %v754
        %v903 = vmax.f32 %v901, %v756
        %v904 = vmax.f32 %v902, %v759
        %v905 = vmax.f32 %v903, %v761
        %v906 = vmax.f32 %v904, %v764
        %v907 = vmax.f32 %v905, %v766
        %v908 = vmax.f32 %v906, %v769
        %v909 = vmax.f32 %v907, %v771
        %v910 = vmax.f32 %v908, %v774
        %v911 = vmax.f32 %v909, %v776
        %v912 = vmax.f32 %v910, %v779
        %v913 = vmax.f32 %v911, %v781
        %v914 = vmax.f32 %v912, %v784
        %v915 = vmax.f32 %v913, %v786
        %v916 = vmax.f32 %v914, %v789
        %v917 = vmax.f32 %v915, %v791
        %v918 = vmax.f32 %v916, %v794
        %v919 = vmax.f32 %v917, %v796
        %v920 = vmax.f32 %v918, %v799
        %v921 = vmax.f32 %v919, %v801
        %v922 = vmax.f32 %v920, %v921
        %v923 = vrot.slane %v922, 4
        %v924 = vmax.f32 %v922, %v923
        %v925 = vrot.slane %v924, 2
        %v926 = vmax.f32 %v924, %v925
        %v927 = vrot.slane %v926, 1
        %v928 = vmax.f32 %v926, %v927
        %v929 = vmax.f32 %v813, %v818
        %v930 = vmax.f32 %v815, %v820
        %v931 = vmax.f32 %v929, %v823
        %v932 = vmax.f32 %v930, %v825
        %v933 = vmax.f32 %v931, %v828
        %v934 = vmax.f32 %v932, %v830
        %v935 = vmax.f32 %v933, %v833
        %v936 = vmax.f32 %v934, %v835
        %v937 = vmax.f32 %v935, %v838
        %v938 = vmax.f32 %v936, %v840
        %v939 = vmax.f32 %v937, %v843
        %v940 = vmax.f32 %v938, %v845
        %v941 = vmax.f32 %v939, %v848
        %v942 = vmax.f32 %v940, %v850
        %v943 = vmax.f32 %v941, %v853
        %v944 = vmax.f32 %v942, %v855
        %v945 = vmax.f32 %v943, %v858
        %v946 = vmax.f32 %v944, %v860
        %v947 = vmax.f32 %v945, %v863
        %v948 = vmax.f32 %v946, %v865
        %v949 = vmax.f32 %v947, %v868
        %v950 = vmax.f32 %v948, %v870
        %v951 = vmax.f32 %v949, %v873
        %v952 = vmax.f32 %v950, %v875
        %v953 = vmax.f32 %v951, %v878
        %v954 = vmax.f32 %v952, %v880
        %v955 = vmax.f32 %v953, %v883
        %v956 = vmax.f32 %v954, %v885
        %v957 = vmax.f32 %v955, %v888
        %v958 = vmax.f32 %v956, %v890
        %v959 = vmax.f32 %v957, %v958
        %v960 = vrot.slane %v959, 4
        %v961 = vmax.f32 %v959, %v960
        %v962 = vrot.slane %v961, 2
        %v963 = vmax.f32 %v961, %v962
        %v964 = vrot.slane %v963, 1
        %v965 = vmax.f32 %v963, %v964
        %v966 = vsub.f32 %v724, %v928
        %v967 = vsub.f32 %v813, %v965
        %v968 = vsub.f32 %v726, %v928
        %v969 = vsub.f32 %v815, %v965
        %v970 = vsub.f32 %v729, %v928
        %v971 = vsub.f32 %v818, %v965
        %v972 = vsub.f32 %v731, %v928
        %v973 = vsub.f32 %v820, %v965
        %v974 = vsub.f32 %v734, %v928
        %v975 = vsub.f32 %v823, %v965
        %v976 = vsub.f32 %v736, %v928
        %v977 = vsub.f32 %v825, %v965
        %v978 = vsub.f32 %v739, %v928
        %v979 = vsub.f32 %v828, %v965
        %v980 = vsub.f32 %v741, %v928
        %v981 = vsub.f32 %v830, %v965
        %v982 = vsub.f32 %v744, %v928
        %v983 = vsub.f32 %v833, %v965
        %v984 = vsub.f32 %v746, %v928
        %v985 = vsub.f32 %v835, %v965
        %v986 = vsub.f32 %v749, %v928
        %v987 = vsub.f32 %v838, %v965
        %v988 = vsub.f32 %v751, %v928
        %v989 = vsub.f32 %v840, %v965
        %v990 = vsub.f32 %v754, %v928
        %v991 = vsub.f32 %v843, %v965
        %v992 = vsub.f32 %v756, %v928
        %v993 = vsub.f32 %v845, %v965
        %v994 = vsub.f32 %v759, %v928
        %v995 = vsub.f32 %v848, %v965
        %v996 = vsub.f32 %v761, %v928
        %v997 = vsub.f32 %v850, %v965
        %v998 = vsub.f32 %v764, %v928
        %v999 = vsub.f32 %v853, %v965
        %v1000 = vsub.f32 %v766, %v928
        %v1001 = vsub.f32 %v855, %v965
        %v1002 = vsub.f32 %v769, %v928
        %v1003 = vsub.f32 %v858, %v965
        %v1004 = vsub.f32 %v771, %v928
        %v1005 = vsub.f32 %v860, %v965
        %v1006 = vsub.f32 %v774, %v928
        %v1007 = vsub.f32 %v863, %v965
        %v1008 = vsub.f32 %v776, %v928
        %v1009 = vsub.f32 %v865, %v965
        %v1010 = vsub.f32 %v779, %v928
        %v1011 = vsub.f32 %v868, %v965
        %v1012 = vsub.f32 %v781, %v928
        %v1013 = vsub.f32 %v870, %v965
        %v1014 = vsub.f32 %v784, %v928
        %v1015 = vsub.f32 %v873, %v965
        %v1016 = vsub.f32 %v786, %v928
        %v1017 = vsub.f32 %v875, %v965
        %v1018 = vsub.f32 %v789, %v928
        %v1019 = vsub.f32 %v878, %v965
        %v1020 = vsub.f32 %v791, %v928
        %v1021 = vsub.f32 %v880, %v965
        %v1022 = vsub.f32 %v794, %v928
        %v1023 = vsub.f32 %v883, %v965
        %v1024 = vsub.f32 %v796, %v928
        %v1025 = vsub.f32 %v885, %v965
        %v1026 = vsub.f32 %v799, %v928
        %v1027 = vsub.f32 %v888, %v965
        %v1028 = vsub.f32 %v801, %v928
        %v1029 = vsub.f32 %v890, %v965
        %v1030 = vmul.f32 %v966, 1.442695
        %v1031 = vpow.pop %v1030
        %v1032 = vmul.f32 %v967, 1.442695
        %v1033 = vpow.pop %v1032
        %v1034 = vmul.f32 %v968, 1.442695
        %v1035 = vpow.pop %v1034
        %v1036 = vmul.f32 %v969, 1.442695
        %v1037 = vpow.pop %v1036
        %v1038 = vmul.f32 %v970, 1.442695
        %v1039 = vpow.pop %v1038
        %v1040 = vmul.f32 %v971, 1.442695
        %v1041 = vpow.pop %v1040
        %v1042 = vmul.f32 %v972, 1.442695
        %v1043 = vpow.pop %v1042
        %v1044 = vmul.f32 %v973, 1.442695
        %v1045 = vpow.pop %v1044
        %v1046 = vmul.f32 %v974, 1.442695
        %v1047 = vpow.pop %v1046
        %v1048 = vmul.f32 %v975, 1.442695
        %v1049 = vpow.pop %v1048
        %v1050 = vmul.f32 %v976, 1.442695
        %v1051 = vpow.pop %v1050
        %v1052 = vmul.f32 %v977, 1.442695
        %v1053 = vpow.pop %v1052
        %v1054 = vmul.f32 %v978, 1.442695
        %v1055 = vpow.pop %v1054
        %v1056 = vmul.f32 %v979, 1.442695
        %v1057 = vpow.pop %v1056
        %v1058 = vmul.f32 %v980, 1.442695
        %v1059 = vpow.pop %v1058
        %v1060 = vmul.f32 %v981, 1.442695
        %v1061 = vpow.pop %v1060
        %v1062 = vmul.f32 %v982, 1.442695
        %v1063 = vpow.pop %v1062
        %v1064 = vmul.f32 %v983, 1.442695
        %v1065 = vpow.pop %v1064
        %v1066 = vmul.f32 %v984, 1.442695
        %v1067 = vpow.pop %v1066
        %v1068 = vmul.f32 %v985, 1.442695
        %v1069 = vpow.pop %v1068
        %v1070 = vmul.f32 %v986, 1.442695
        %v1071 = vpow.pop %v1070
        %v1072 = vmul.f32 %v987, 1.442695
        %v1073 = vpow.pop %v1072
        %v1074 = vmul.f32 %v988, 1.442695
        %v1075 = vpow.pop %v1074
        %v1076 = vmul.f32 %v989, 1.442695
        %v1077 = vpow.pop %v1076
        %v1078 = vmul.f32 %v990, 1.442695
        %v1079 = vpow.pop %v1078
        %v1080 = vmul.f32 %v991, 1.442695
        %v1081 = vpow.pop %v1080
        %v1082 = vmul.f32 %v992, 1.442695
        %v1083 = vpow.pop %v1082
        %v1084 = vmul.f32 %v993, 1.442695
        %v1085 = vpow.pop %v1084
        %v1086 = vmul.f32 %v994, 1.442695
        %v1087 = vpow.pop %v1086
        %v1088 = vmul.f32 %v995, 1.442695
        %v1089 = vpow.pop %v1088
        %v1090 = vmul.f32 %v996, 1.442695
        %v1091 = vpow.pop %v1090
        %v1092 = vmul.f32 %v997, 1.442695
        %v1093 = vpow.pop %v1092
        %v1094 = vmul.f32 %v998, 1.442695
        %v1095 = vpow.pop %v1094
        %v1096 = vmul.f32 %v999, 1.442695
        %v1097 = vpow.pop %v1096
        %v1098 = vmul.f32 %v1000, 1.442695
        %v1099 = vpow.pop %v1098
        %v1100 = vmul.f32 %v1001, 1.442695
        %v1101 = vpow.pop %v1100
        %v1102 = vmul.f32 %v1002, 1.442695
        %v1103 = vpow.pop %v1102
        %v1104 = vmul.f32 %v1003, 1.442695
        %v1105 = vpow.pop %v1104
        %v1106 = vmul.f32 %v1004, 1.442695
        %v1107 = vpow.pop %v1106
        %v1108 = vmul.f32 %v1005, 1.442695
        %v1109 = vpow.pop %v1108
        %v1110 = vmul.f32 %v1006, 1.442695
        %v1111 = vpow.pop %v1110
        %v1112 = vmul.f32 %v1007, 1.442695
        %v1113 = vpow.pop %v1112
        %v1114 = vmul.f32 %v1008, 1.442695
        %v1115 = vpow.pop %v1114
        %v1116 = vmul.f32 %v1009, 1.442695
        %v1117 = vpow.pop %v1116
        %v1118 = vmul.f32 %v1010, 1.442695
        %v1119 = vpow.pop %v1118
        %v1120 = vmul.f32 %v1011, 1.442695
        %v1121 = vpow.pop %v1120
        %v1122 = vmul.f32 %v1012, 1.442695
        %v1123 = vpow.pop %v1122
        %v1124 = vmul.f32 %v1013, 1.442695
        %v1125 = vpow.pop %v1124
        %v1126 = vmul.f32 %v1014, 1.442695
        %v1127 = vpow.pop %v1126
        %v1128 = vmul.f32 %v1015, 1.442695
        %v1129 = vpow.pop %v1128
        %v1130 = vmul.f32 %v1016, 1.442695
        %v1131 = vpow.pop %v1130
        %v1132 = vmul.f32 %v1017, 1.442695
        %v1133 = vpow.pop %v1132
        %v1134 = vmul.f32 %v1018, 1.442695
        %v1135 = vpow.pop %v1134
        %v1136 = vmul.f32 %v1019, 1.442695
        %v1137 = vpow.pop %v1136
        %v1138 = vmul.f32 %v1020, 1.442695
        %v1139 = vpow.pop %v1138
        %v1140 = vmul.f32 %v1021, 1.442695
        %v1141 = vpow.pop %v1140
        %v1142 = vmul.f32 %v1022, 1.442695
        %v1143 = vpow.pop %v1142
        %v1144 = vmul.f32 %v1023, 1.442695
        %v1145 = vpow.pop %v1144
        %v1146 = vmul.f32 %v1024, 1.442695
        %v1147 = vpow.pop %v1146
        %v1148 = vmul.f32 %v1025, 1.442695
        %v1149 = vpow.pop %v1148
        %v1150 = vmul.f32 %v1026, 1.442695
        %v1151 = vpow.pop %v1150
        %v1152 = vmul.f32 %v1027, 1.442695
        %v1153 = vpow.pop %v1152
        %v1154 = vmul.f32 %v1028, 1.442695
        %v1155 = vpow.pop %v1154
        %v1156 = vmul.f32 %v1029, 1.442695
        %v1157 = vpow.pop %v1156
        %v1158 = vadd.f32 %v1031, %v1035
        %v1159 = vadd.f32 %v1158, %v1039
        %v1160 = vadd.f32 %v1159, %v1043
        %v1161 = vadd.f32 %v1160, %v1047
        %v1162 = vadd.f32 %v1161, %v1051
        %v1163 = vadd.f32 %v1162, %v1055
        %v1164 = vadd.f32 %v1163, %v1059
        %v1165 = vadd.f32 %v1164, %v1063
        %v1166 = vadd.f32 %v1165, %v1067
        %v1167 = vadd.f32 %v1166, %v1071
        %v1168 = vadd.f32 %v1167, %v1075
        %v1169 = vadd.f32 %v1168, %v1079
        %v1170 = vadd.f32 %v1169, %v1083
        %v1171 = vadd.f32 %v1170, %v1087
        %v1172 = vadd.f32 %v1171, %v1091
        %v1173 = vadd.f32 %v1172, %v1095
        %v1174 = vadd.f32 %v1173, %v1099
        %v1175 = vadd.f32 %v1174, %v1103
        %v1176 = vadd.f32 %v1175, %v1107
        %v1177 = vadd.f32 %v1176, %v1111
        %v1178 = vadd.f32 %v1177, %v1115
        %v1179 = vadd.f32 %v1178, %v1119
        %v1180 = vadd.f32 %v1179, %v1123
        %v1181 = vadd.f32 %v1180, %v1127
        %v1182 = vadd.f32 %v1181, %v1131
        %v1183 = vadd.f32 %v1182, %v1135
        %v1184 = vadd.f32 %v1183, %v1139
        %v1185 = vadd.f32 %v1184, %v1143
        %v1186 = vadd.f32 %v1185, %v1147
        %v1187 = vadd.f32 %v1186, %v1151
        %v1188 = vadd.f32 %v1187, %v1155
        %v1189 = vrot.slane %v1188, 4
        %v1190 = vadd.f32 %v1188, %v1189
        %v1191 = vrot.slane %v1190, 2
        %v1192 = vadd.f32 %v1190, %v1191
        %v1193 = vrot.slane %v1192, 1
        %v1194 = vadd.f32 %v1192, %v1193
        %v1195 = vadd.f32 %v1033, %v1037
        %v1196 = vadd.f32 %v1195, %v1041
        %v1197 = vadd.f32 %v1196, %v1045
        %v1198 = vadd.f32 %v1197, %v1049
        %v1199 = vadd.f32 %v1198, %v1053
        %v1200 = vadd.f32 %v1199, %v1057
        %v1201 = vadd.f32 %v1200, %v1061
        %v1202 = vadd.f32 %v1201, %v1065
        %v1203 = vadd.f32 %v1202, %v1069
        %v1204 = vadd.f32 %v1203, %v1073
        %v1205 = vadd.f32 %v1204, %v1077
        %v1206 = vadd.f32 %v1205, %v1081
        %v1207 = vadd.f32 %v1206, %v1085
        %v1208 = vadd.f32 %v1207, %v1089
        %v1209 = vadd.f32 %v1208, %v1093
        %v1210 = vadd.f32 %v1209, %v1097
        %v1211 = vadd.f32 %v1210, %v1101
        %v1212 = vadd.f32 %v1211, %v1105
        %v1213 = vadd.f32 %v1212, %v1109
        %v1214 = vadd.f32 %v1213, %v1113
        %v1215 = vadd.f32 %v1214, %v1117
        %v1216 = vadd.f32 %v1215, %v1121
        %v1217 = vadd.f32 %v1216, %v1125
        %v1218 = vadd.f32 %v1217, %v1129
        %v1219 = vadd.f32 %v1218, %v1133
        %v1220 = vadd.f32 %v1219, %v1137
        %v1221 = vadd.f32 %v1220, %v1141
        %v1222 = vadd.f32 %v1221, %v1145
        %v1223 = vadd.f32 %v1222, %v1149
        %v1224 = vadd.f32 %v1223, %v1153
        %v1225 = vadd.f32 %v1224, %v1157
        %v1226 = vrot.slane %v1225, 4
        %v1227 = vadd.f32 %v1225, %v1226
        %v1228 = vrot.slane %v1227, 2
        %v1229 = vadd.f32 %v1227, %v1228
        %v1230 = vrot.slane %v1229, 1
        %v1231 = vadd.f32 %v1229, %v1230
        %v1232 = vpack.c.bf16 %v1035, %v1031
        %v1233 = vpack.c.bf16 %v1037, %v1033
        %v1234 = vpack.c.bf16 %v1043, %v1039
        %v1235 = vpack.c.bf16 %v1045, %v1041
        %v1236 = vpack.c.bf16 %v1051, %v1047
        %v1237 = vpack.c.bf16 %v1053, %v1049
        %v1238 = vpack.c.bf16 %v1059, %v1055
        %v1239 = vpack.c.bf16 %v1061, %v1057
        %v1240 = vpack.c.bf16 %v1067, %v1063
        %v1241 = vpack.c.bf16 %v1069, %v1065
        %v1242 = vpack.c.bf16 %v1075, %v1071
        %v1243 = vpack.c.bf16 %v1077, %v1073
        %v1244 = vpack.c.bf16 %v1083, %v1079
        %v1245 = vpack.c.bf16 %v1085, %v1081
        %v1246 = vpack.c.bf16 %v1091, %v1087
        %v1247 = vpack.c.bf16 %v1093, %v1089
        %v1248 = vpack.c.bf16 %v1099, %v1095
        %v1249 = vpack.c.bf16 %v1101, %v1097
        %v1250 = vpack.c.bf16 %v1107, %v1103
        %v1251 = vpack.c.bf16 %v1109, %v1105
        %v1252 = vpack.c.bf16 %v1115, %v1111
        %v1253 = vpack.c.bf16 %v1117, %v1113
        %v1254 = vpack.c.bf16 %v1123, %v1119
        %v1255 = vpack.c.bf16 %v1125, %v1121
        %v1256 = vpack.c.bf16 %v1131, %v1127
        %v1257 = vpack.c.bf16 %v1133, %v1129
        %v1258 = vpack.c.bf16 %v1139, %v1135
        %v1259 = vpack.c.bf16 %v1141, %v1137
        %v1260 = vpack.c.bf16 %v1147, %v1143
        %v1261 = vpack.c.bf16 %v1149, %v1145
        %v1262 = vpack.c.bf16 %v1155, %v1151
        %v1263 = vpack.c.bf16 %v1157, %v1153
        %1264 = vmatpush.bf16.msra.mxu0 %v1246
        %1265 = vmatpush.bf16.msra.mxu0 %v1244
        %1266 = vmatpush.bf16.msra.mxu0 %v1242
        %1267 = vmatpush.bf16.msra.mxu0 %v1240
        %1268 = vmatpush.bf16.msra.mxu0 %v1238
        %1269 = vmatpush.bf16.msra.mxu0 %v1236
        %1270 = vmatpush.bf16.msra.mxu0 %v1234
        %1271 = vmatpush.bf16.msra.mxu0 %v1232
        %1272 = vmatmul.bf16.gmra.mxu0 %v656
        %v1273 = vpop.f32.mrf.mxu0
        %v1274 = vadd.f32 0.0, %v1273
        %v1275 = vpop.f32.mrf.mxu0
        %1276 = vdwg.mxu0
        %1277 = vmatpush.bf16.msra.mxu0 %v1262
        %1278 = vmatpush.bf16.msra.mxu0 %v1260
        %1279 = vmatpush.bf16.msra.mxu0 %v1258
        %1280 = vmatpush.bf16.msra.mxu0 %v1256
        %1281 = vmatpush.bf16.msra.mxu0 %v1254
        %1282 = vmatpush.bf16.msra.mxu0 %v1252
        %1283 = vmatpush.bf16.msra.mxu0 %v1250
        %1284 = vmatpush.bf16.msra.mxu0 %v1248
        %1285 = vmatmul.bf16.gmra.mxu0 %v657
        %v1286 = vpop.f32.mrf.mxu0
        %v1287 = vadd.f32 %v1274, %v1286
        %v1288 = vpop.f32.mrf.mxu0
        %1289 = vdwg.mxu0
        %1290 = vmatpush.bf16.msra.mxu0 %v1247
        %1291 = vmatpush.bf16.msra.mxu0 %v1245
        %1292 = vmatpush.bf16.msra.mxu0 %v1243
        %1293 = vmatpush.bf16.msra.mxu0 %v1241
        %1294 = vmatpush.bf16.msra.mxu0 %v1239
        %1295 = vmatpush.bf16.msra.mxu0 %v1237
        %1296 = vmatpush.bf16.msra.mxu0 %v1235
        %1297 = vmatpush.bf16.msra.mxu0 %v1233
        %1298 = vmatmul.bf16.gmra.mxu0 %v656
        %v1299 = vpop.f32.mrf.mxu0
        %v1300 = vadd.f32 0.0, %v1299
        %v1301 = vpop.f32.mrf.mxu0
        %1302 = vdwg.mxu0
        %1303 = vmatpush.bf16.msra.mxu0 %v1263
        %1304 = vmatpush.bf16.msra.mxu0 %v1261
        %1305 = vmatpush.bf16.msra.mxu0 %v1259
        %1306 = vmatpush.bf16.msra.mxu0 %v1257
        %1307 = vmatpush.bf16.msra.mxu0 %v1255
        %1308 = vmatpush.bf16.msra.mxu0 %v1253
        %1309 = vmatpush.bf16.msra.mxu0 %v1251
        %1310 = vmatpush.bf16.msra.mxu0 %v1249
        %1311 = vmatmul.bf16.gmra.mxu0 %v657
        %v1312 = vpop.f32.mrf.mxu0
        %v1313 = vadd.f32 %v1300, %v1312
        %v1314 = vpop.f32.mrf.mxu0
        %1315 = vdwg.mxu0
        %v1316 = vrcp.pop %v1194
        %v1317 = vrcp.pop %v1231
        %v1318 = vmul.f32 %v1287, %v1316
        %v1319 = vmul.f32 %v1313, %v1317
        %1336 = vrot.lane.b32.xlu0 %v640, 124
        %v1337 = vpop.permute.xlu0 %1336
        %1338 = vrot.lane.b32.xlu0 %v641, 124
        %v1339 = vpop.permute.xlu0 %1338
        %1340 = vrot.lane.b32.xlu0 %v642, 124
        %v1341 = vpop.permute.xlu0 %1340
        %1342 = vrot.lane.b32.xlu0 %v643, 124
        %v1343 = vpop.permute.xlu0 %1342
        %1344 = vrot.lane.b32.xlu0 %v644, 124
        %v1345 = vpop.permute.xlu0 %1344
        %1346 = vrot.lane.b32.xlu0 %v645, 124
        %v1347 = vpop.permute.xlu0 %1346
        %1348 = vrot.lane.b32.xlu0 %v646, 124
        %v1349 = vpop.permute.xlu0 %1348
        %1350 = vrot.lane.b32.xlu0 %v647, 124
        %v1351 = vpop.permute.xlu0 %1350
        %1352 = vrot.lane.b32.xlu0 %v648, 124
        %v1353 = vpop.permute.xlu0 %1352
        %1354 = vrot.lane.b32.xlu0 %v649, 124
        %v1355 = vpop.permute.xlu0 %1354
        %1356 = vrot.lane.b32.xlu0 %v650, 124
        %v1357 = vpop.permute.xlu0 %1356
        %1358 = vrot.lane.b32.xlu0 %v651, 124
        %v1359 = vpop.permute.xlu0 %1358
        %1360 = vrot.lane.b32.xlu0 %v652, 124
        %v1361 = vpop.permute.xlu0 %1360
        %1362 = vrot.lane.b32.xlu0 %v653, 124
        %v1363 = vpop.permute.xlu0 %1362
        %1364 = vrot.lane.b32.xlu0 %v654, 124
        %v1365 = vpop.permute.xlu0 %1364
        %1366 = vrot.lane.b32.xlu0 %v655, 124
        %v1367 = vpop.permute.xlu0 %1366
        %v1370 = vrot.slane %v638, 2
        %v1371 = vrot.slane %v639, 2
        %v1373 = vsel %vm658, %v1337, 0
        %v1376 = vsel %vm658, %v1339, 0
        %v1379 = vsel %vm658, %v1341, 0
        %v1382 = vsel %vm658, %v1343, 0
        %v1385 = vsel %vm658, %v1345, 0
        %v1388 = vsel %vm658, %v1347, 0
        %v1391 = vsel %vm658, %v1349, 0
        %v1394 = vsel %vm658, %v1351, 0
        %v1397 = vsel %vm658, %v1353, 0
        %v1400 = vsel %vm658, %v1355, 0
        %v1403 = vsel %vm658, %v1357, 0
        %v1406 = vsel %vm658, %v1359, 0
        %v1409 = vsel %vm658, %v1361, 0
        %v1412 = vsel %vm658, %v1363, 0
        %v1415 = vsel %vm658, %v1365, 0
        %v1418 = vsel %vm658, %v1367, 0
        %v1421 = vsel %vm707, %v1370, 0
        %v1424 = vsel %vm707, %v1371, 0
        %1426 = vmatpush.bf16.msra.mxu0 0
        %1427 = vmatpush.bf16.msra.mxu0 0
        %1428 = vmatpush.bf16.msra.mxu0 0
        %1429 = vmatpush.bf16.msra.mxu0 0
        %1430 = vmatpush.bf16.msra.mxu0 0
        %1431 = vmatpush.bf16.msra.mxu0 0
        %1432 = vmatpush.bf16.msra.mxu0 0
        %1433 = vmatpush.bf16.msra.mxu0 %v1421
        %1434 = vmatmul.bf16.gmra.mxu0 %v1373
        %v1435 = vpop.f32.mrf.mxu0
        %v1436 = vadd.f32 0.0, %v1435
        %v1437 = vpop.f32.mrf.mxu0
        %v1438 = vadd.f32 0.0, %v1437
        %1439 = vmatmul.bf16.gmra.mxu0 %v1376
        %v1440 = vpop.f32.mrf.mxu0
        %v1441 = vadd.f32 0.0, %v1440
        %v1442 = vpop.f32.mrf.mxu0
        %v1443 = vadd.f32 0.0, %v1442
        %1444 = vmatmul.bf16.gmra.mxu0 %v1379
        %v1445 = vpop.f32.mrf.mxu0
        %v1446 = vadd.f32 0.0, %v1445
        %v1447 = vpop.f32.mrf.mxu0
        %v1448 = vadd.f32 0.0, %v1447
        %1449 = vmatmul.bf16.gmra.mxu0 %v1382
        %v1450 = vpop.f32.mrf.mxu0
        %v1451 = vadd.f32 0.0, %v1450
        %v1452 = vpop.f32.mrf.mxu0
        %v1453 = vadd.f32 0.0, %v1452
        %1454 = vmatmul.bf16.gmra.mxu0 %v1385
        %v1455 = vpop.f32.mrf.mxu0
        %v1456 = vadd.f32 0.0, %v1455
        %v1457 = vpop.f32.mrf.mxu0
        %v1458 = vadd.f32 0.0, %v1457
        %1459 = vmatmul.bf16.gmra.mxu0 %v1388
        %v1460 = vpop.f32.mrf.mxu0
        %v1461 = vadd.f32 0.0, %v1460
        %v1462 = vpop.f32.mrf.mxu0
        %v1463 = vadd.f32 0.0, %v1462
        %1464 = vmatmul.bf16.gmra.mxu0 %v1391
        %v1465 = vpop.f32.mrf.mxu0
        %v1466 = vadd.f32 0.0, %v1465
        %v1467 = vpop.f32.mrf.mxu0
        %v1468 = vadd.f32 0.0, %v1467
        %1469 = vmatmul.bf16.gmra.mxu0 %v1394
        %v1470 = vpop.f32.mrf.mxu0
        %v1471 = vadd.f32 0.0, %v1470
        %v1472 = vpop.f32.mrf.mxu0
        %v1473 = vadd.f32 0.0, %v1472
        %1474 = vmatmul.bf16.gmra.mxu0 %v1397
        %v1475 = vpop.f32.mrf.mxu0
        %v1476 = vadd.f32 0.0, %v1475
        %v1477 = vpop.f32.mrf.mxu0
        %v1478 = vadd.f32 0.0, %v1477
        %1479 = vmatmul.bf16.gmra.mxu0 %v1400
        %v1480 = vpop.f32.mrf.mxu0
        %v1481 = vadd.f32 0.0, %v1480
        %v1482 = vpop.f32.mrf.mxu0
        %v1483 = vadd.f32 0.0, %v1482
        %1484 = vmatmul.bf16.gmra.mxu0 %v1403
        %v1485 = vpop.f32.mrf.mxu0
        %v1486 = vadd.f32 0.0, %v1485
        %v1487 = vpop.f32.mrf.mxu0
        %v1488 = vadd.f32 0.0, %v1487
        %1489 = vmatmul.bf16.gmra.mxu0 %v1406
        %v1490 = vpop.f32.mrf.mxu0
        %v1491 = vadd.f32 0.0, %v1490
        %v1492 = vpop.f32.mrf.mxu0
        %v1493 = vadd.f32 0.0, %v1492
        %1494 = vmatmul.bf16.gmra.mxu0 %v1409
        %v1495 = vpop.f32.mrf.mxu0
        %v1496 = vadd.f32 0.0, %v1495
        %v1497 = vpop.f32.mrf.mxu0
        %v1498 = vadd.f32 0.0, %v1497
        %1499 = vmatmul.bf16.gmra.mxu0 %v1412
        %v1500 = vpop.f32.mrf.mxu0
        %v1501 = vadd.f32 0.0, %v1500
        %v1502 = vpop.f32.mrf.mxu0
        %v1503 = vadd.f32 0.0, %v1502
        %1504 = vmatmul.bf16.gmra.mxu0 %v1415
        %v1505 = vpop.f32.mrf.mxu0
        %v1506 = vadd.f32 0.0, %v1505
        %v1507 = vpop.f32.mrf.mxu0
        %v1508 = vadd.f32 0.0, %v1507
        %1509 = vmatmul.bf16.gmra.mxu0 %v1418
        %v1510 = vpop.f32.mrf.mxu0
        %v1511 = vadd.f32 0.0, %v1510
        %v1512 = vpop.f32.mrf.mxu0
        %v1513 = vadd.f32 0.0, %v1512
        %1514 = vdwg.mxu0
        %1515 = vmatpush.bf16.msra.mxu0 0
        %1516 = vmatpush.bf16.msra.mxu0 0
        %1517 = vmatpush.bf16.msra.mxu0 0
        %1518 = vmatpush.bf16.msra.mxu0 0
        %1519 = vmatpush.bf16.msra.mxu0 0
        %1520 = vmatpush.bf16.msra.mxu0 0
        %1521 = vmatpush.bf16.msra.mxu0 0
        %1522 = vmatpush.bf16.msra.mxu0 %v1424
        %1523 = vmatmul.bf16.gmra.mxu0 %v1373
        %v1524 = vpop.f32.mrf.mxu0
        %v1525 = vadd.f32 0.0, %v1524
        %v1526 = vpop.f32.mrf.mxu0
        %v1527 = vadd.f32 0.0, %v1526
        %1528 = vmatmul.bf16.gmra.mxu0 %v1376
        %v1529 = vpop.f32.mrf.mxu0
        %v1530 = vadd.f32 0.0, %v1529
        %v1531 = vpop.f32.mrf.mxu0
        %v1532 = vadd.f32 0.0, %v1531
        %1533 = vmatmul.bf16.gmra.mxu0 %v1379
        %v1534 = vpop.f32.mrf.mxu0
        %v1535 = vadd.f32 0.0, %v1534
        %v1536 = vpop.f32.mrf.mxu0
        %v1537 = vadd.f32 0.0, %v1536
        %1538 = vmatmul.bf16.gmra.mxu0 %v1382
        %v1539 = vpop.f32.mrf.mxu0
        %v1540 = vadd.f32 0.0, %v1539
        %v1541 = vpop.f32.mrf.mxu0
        %v1542 = vadd.f32 0.0, %v1541
        %1543 = vmatmul.bf16.gmra.mxu0 %v1385
        %v1544 = vpop.f32.mrf.mxu0
        %v1545 = vadd.f32 0.0, %v1544
        %v1546 = vpop.f32.mrf.mxu0
        %v1547 = vadd.f32 0.0, %v1546
        %1548 = vmatmul.bf16.gmra.mxu0 %v1388
        %v1549 = vpop.f32.mrf.mxu0
        %v1550 = vadd.f32 0.0, %v1549
        %v1551 = vpop.f32.mrf.mxu0
        %v1552 = vadd.f32 0.0, %v1551
        %1553 = vmatmul.bf16.gmra.mxu0 %v1391
        %v1554 = vpop.f32.mrf.mxu0
        %v1555 = vadd.f32 0.0, %v1554
        %v1556 = vpop.f32.mrf.mxu0
        %v1557 = vadd.f32 0.0, %v1556
        %1558 = vmatmul.bf16.gmra.mxu0 %v1394
        %v1559 = vpop.f32.mrf.mxu0
        %v1560 = vadd.f32 0.0, %v1559
        %v1561 = vpop.f32.mrf.mxu0
        %v1562 = vadd.f32 0.0, %v1561
        %1563 = vmatmul.bf16.gmra.mxu0 %v1397
        %v1564 = vpop.f32.mrf.mxu0
        %v1565 = vadd.f32 0.0, %v1564
        %v1566 = vpop.f32.mrf.mxu0
        %v1567 = vadd.f32 0.0, %v1566
        %1568 = vmatmul.bf16.gmra.mxu0 %v1400
        %v1569 = vpop.f32.mrf.mxu0
        %v1570 = vadd.f32 0.0, %v1569
        %v1571 = vpop.f32.mrf.mxu0
        %v1572 = vadd.f32 0.0, %v1571
        %1573 = vmatmul.bf16.gmra.mxu0 %v1403
        %v1574 = vpop.f32.mrf.mxu0
        %v1575 = vadd.f32 0.0, %v1574
        %v1576 = vpop.f32.mrf.mxu0
        %v1577 = vadd.f32 0.0, %v1576
        %1578 = vmatmul.bf16.gmra.mxu0 %v1406
        %v1579 = vpop.f32.mrf.mxu0
        %v1580 = vadd.f32 0.0, %v1579
        %v1581 = vpop.f32.mrf.mxu0
        %v1582 = vadd.f32 0.0, %v1581
        %1583 = vmatmul.bf16.gmra.mxu0 %v1409
        %v1584 = vpop.f32.mrf.mxu0
        %v1585 = vadd.f32 0.0, %v1584
        %v1586 = vpop.f32.mrf.mxu0
        %v1587 = vadd.f32 0.0, %v1586
        %1588 = vmatmul.bf16.gmra.mxu0 %v1412
        %v1589 = vpop.f32.mrf.mxu0
        %v1590 = vadd.f32 0.0, %v1589
        %v1591 = vpop.f32.mrf.mxu0
        %v1592 = vadd.f32 0.0, %v1591
        %1593 = vmatmul.bf16.gmra.mxu0 %v1415
        %v1594 = vpop.f32.mrf.mxu0
        %v1595 = vadd.f32 0.0, %v1594
        %v1596 = vpop.f32.mrf.mxu0
        %v1597 = vadd.f32 0.0, %v1596
        %1598 = vmatmul.bf16.gmra.mxu0 %v1418
        %v1599 = vpop.f32.mrf.mxu0
        %v1600 = vadd.f32 0.0, %v1599
        %v1601 = vpop.f32.mrf.mxu0
        %v1602 = vadd.f32 0.0, %v1601
        %1603 = vdwg.mxu0
        %v1604 = vmax.f32 %v1436, %v1441
        %v1605 = vmax.f32 %v1438, %v1443
        %v1606 = vmax.f32 %v1604, %v1446
        %v1607 = vmax.f32 %v1605, %v1448
        %v1608 = vmax.f32 %v1606, %v1451
        %v1609 = vmax.f32 %v1607, %v1453
        %v1610 = vmax.f32 %v1608, %v1456
        %v1611 = vmax.f32 %v1609, %v1458
        %v1612 = vmax.f32 %v1610, %v1461
        %v1613 = vmax.f32 %v1611, %v1463
        %v1614 = vmax.f32 %v1612, %v1466
        %v1615 = vmax.f32 %v1613, %v1468
        %v1616 = vmax.f32 %v1614, %v1471
        %v1617 = vmax.f32 %v1615, %v1473
        %v1618 = vmax.f32 %v1616, %v1476
        %v1619 = vmax.f32 %v1617, %v1478
        %v1620 = vmax.f32 %v1618, %v1481
        %v1621 = vmax.f32 %v1619, %v1483
        %v1622 = vmax.f32 %v1620, %v1486
        %v1623 = vmax.f32 %v1621, %v1488
        %v1624 = vmax.f32 %v1622, %v1491
        %v1625 = vmax.f32 %v1623, %v1493
        %v1626 = vmax.f32 %v1624, %v1496
        %v1627 = vmax.f32 %v1625, %v1498
        %v1628 = vmax.f32 %v1626, %v1501
        %v1629 = vmax.f32 %v1627, %v1503
        %v1630 = vmax.f32 %v1628, %v1506
        %v1631 = vmax.f32 %v1629, %v1508
        %v1632 = vmax.f32 %v1630, %v1511
        %v1633 = vmax.f32 %v1631, %v1513
        %v1634 = vmax.f32 %v1632, %v1633
        %v1635 = vrot.slane %v1634, 4
        %v1636 = vmax.f32 %v1634, %v1635
        %v1637 = vrot.slane %v1636, 2
        %v1638 = vmax.f32 %v1636, %v1637
        %v1639 = vrot.slane %v1638, 1
        %v1640 = vmax.f32 %v1638, %v1639
        %v1641 = vmax.f32 %v1525, %v1530
        %v1642 = vmax.f32 %v1527, %v1532
        %v1643 = vmax.f32 %v1641, %v1535
        %v1644 = vmax.f32 %v1642, %v1537
        %v1645 = vmax.f32 %v1643, %v1540
        %v1646 = vmax.f32 %v1644, %v1542
        %v1647 = vmax.f32 %v1645, %v1545
        %v1648 = vmax.f32 %v1646, %v1547
        %v1649 = vmax.f32 %v1647, %v1550
        %v1650 = vmax.f32 %v1648, %v1552
        %v1651 = vmax.f32 %v1649, %v1555
        %v1652 = vmax.f32 %v1650, %v1557
        %v1653 = vmax.f32 %v1651, %v1560
        %v1654 = vmax.f32 %v1652, %v1562
        %v1655 = vmax.f32 %v1653, %v1565
        %v1656 = vmax.f32 %v1654, %v1567
        %v1657 = vmax.f32 %v1655, %v1570
        %v1658 = vmax.f32 %v1656, %v1572
        %v1659 = vmax.f32 %v1657, %v1575
        %v1660 = vmax.f32 %v1658, %v1577
        %v1661 = vmax.f32 %v1659, %v1580
        %v1662 = vmax.f32 %v1660, %v1582
        %v1663 = vmax.f32 %v1661, %v1585
        %v1664 = vmax.f32 %v1662, %v1587
        %v1665 = vmax.f32 %v1663, %v1590
        %v1666 = vmax.f32 %v1664, %v1592
        %v1667 = vmax.f32 %v1665, %v1595
        %v1668 = vmax.f32 %v1666, %v1597
        %v1669 = vmax.f32 %v1667, %v1600
        %v1670 = vmax.f32 %v1668, %v1602
        %v1671 = vmax.f32 %v1669, %v1670
        %v1672 = vrot.slane %v1671, 4
        %v1673 = vmax.f32 %v1671, %v1672
        %v1674 = vrot.slane %v1673, 2
        %v1675 = vmax.f32 %v1673, %v1674
        %v1676 = vrot.slane %v1675, 1
        %v1677 = vmax.f32 %v1675, %v1676
        %v1678 = vsub.f32 %v1436, %v1640
        %v1679 = vsub.f32 %v1525, %v1677
        %v1680 = vsub.f32 %v1438, %v1640
        %v1681 = vsub.f32 %v1527, %v1677
        %v1682 = vsub.f32 %v1441, %v1640
        %v1683 = vsub.f32 %v1530, %v1677
        %v1684 = vsub.f32 %v1443, %v1640
        %v1685 = vsub.f32 %v1532, %v1677
        %v1686 = vsub.f32 %v1446, %v1640
        %v1687 = vsub.f32 %v1535, %v1677
        %v1688 = vsub.f32 %v1448, %v1640
        %v1689 = vsub.f32 %v1537, %v1677
        %v1690 = vsub.f32 %v1451, %v1640
        %v1691 = vsub.f32 %v1540, %v1677
        %v1692 = vsub.f32 %v1453, %v1640
        %v1693 = vsub.f32 %v1542, %v1677
        %v1694 = vsub.f32 %v1456, %v1640
        %v1695 = vsub.f32 %v1545, %v1677
        %v1696 = vsub.f32 %v1458, %v1640
        %v1697 = vsub.f32 %v1547, %v1677
        %v1698 = vsub.f32 %v1461, %v1640
        %v1699 = vsub.f32 %v1550, %v1677
        %v1700 = vsub.f32 %v1463, %v1640
        %v1701 = vsub.f32 %v1552, %v1677
        %v1702 = vsub.f32 %v1466, %v1640
        %v1703 = vsub.f32 %v1555, %v1677
        %v1704 = vsub.f32 %v1468, %v1640
        %v1705 = vsub.f32 %v1557, %v1677
        %v1706 = vsub.f32 %v1471, %v1640
        %v1707 = vsub.f32 %v1560, %v1677
        %v1708 = vsub.f32 %v1473, %v1640
        %v1709 = vsub.f32 %v1562, %v1677
        %v1710 = vsub.f32 %v1476, %v1640
        %v1711 = vsub.f32 %v1565, %v1677
        %v1712 = vsub.f32 %v1478, %v1640
        %v1713 = vsub.f32 %v1567, %v1677
        %v1714 = vsub.f32 %v1481, %v1640
        %v1715 = vsub.f32 %v1570, %v1677
        %v1716 = vsub.f32 %v1483, %v1640
        %v1717 = vsub.f32 %v1572, %v1677
        %v1718 = vsub.f32 %v1486, %v1640
        %v1719 = vsub.f32 %v1575, %v1677
        %v1720 = vsub.f32 %v1488, %v1640
        %v1721 = vsub.f32 %v1577, %v1677
        %v1722 = vsub.f32 %v1491, %v1640
        %v1723 = vsub.f32 %v1580, %v1677
        %v1724 = vsub.f32 %v1493, %v1640
        %v1725 = vsub.f32 %v1582, %v1677
        %v1726 = vsub.f32 %v1496, %v1640
        %v1727 = vsub.f32 %v1585, %v1677
        %v1728 = vsub.f32 %v1498, %v1640
        %v1729 = vsub.f32 %v1587, %v1677
        %v1730 = vsub.f32 %v1501, %v1640
        %v1731 = vsub.f32 %v1590, %v1677
        %v1732 = vsub.f32 %v1503, %v1640
        %v1733 = vsub.f32 %v1592, %v1677
        %v1734 = vsub.f32 %v1506, %v1640
        %v1735 = vsub.f32 %v1595, %v1677
        %v1736 = vsub.f32 %v1508, %v1640
        %v1737 = vsub.f32 %v1597, %v1677
        %v1738 = vsub.f32 %v1511, %v1640
        %v1739 = vsub.f32 %v1600, %v1677
        %v1740 = vsub.f32 %v1513, %v1640
        %v1741 = vsub.f32 %v1602, %v1677
        %v1742 = vmul.f32 %v1678, 1.442695
        %v1743 = vpow.pop %v1742
        %v1744 = vmul.f32 %v1679, 1.442695
        %v1745 = vpow.pop %v1744
        %v1746 = vmul.f32 %v1680, 1.442695
        %v1747 = vpow.pop %v1746
        %v1748 = vmul.f32 %v1681, 1.442695
        %v1749 = vpow.pop %v1748
        %v1750 = vmul.f32 %v1682, 1.442695
        %v1751 = vpow.pop %v1750
        %v1752 = vmul.f32 %v1683, 1.442695
        %v1753 = vpow.pop %v1752
        %v1754 = vmul.f32 %v1684, 1.442695
        %v1755 = vpow.pop %v1754
        %v1756 = vmul.f32 %v1685, 1.442695
        %v1757 = vpow.pop %v1756
        %v1758 = vmul.f32 %v1686, 1.442695
        %v1759 = vpow.pop %v1758
        %v1760 = vmul.f32 %v1687, 1.442695
        %v1761 = vpow.pop %v1760
        %v1762 = vmul.f32 %v1688, 1.442695
        %v1763 = vpow.pop %v1762
        %v1764 = vmul.f32 %v1689, 1.442695
        %v1765 = vpow.pop %v1764
        %v1766 = vmul.f32 %v1690, 1.442695
        %v1767 = vpow.pop %v1766
        %v1768 = vmul.f32 %v1691, 1.442695
        %v1769 = vpow.pop %v1768
        %v1770 = vmul.f32 %v1692, 1.442695
        %v1771 = vpow.pop %v1770
        %v1772 = vmul.f32 %v1693, 1.442695
        %v1773 = vpow.pop %v1772
        %v1774 = vmul.f32 %v1694, 1.442695
        %v1775 = vpow.pop %v1774
        %v1776 = vmul.f32 %v1695, 1.442695
        %v1777 = vpow.pop %v1776
        %v1778 = vmul.f32 %v1696, 1.442695
        %v1779 = vpow.pop %v1778
        %v1780 = vmul.f32 %v1697, 1.442695
        %v1781 = vpow.pop %v1780
        %v1782 = vmul.f32 %v1698, 1.442695
        %v1783 = vpow.pop %v1782
        %v1784 = vmul.f32 %v1699, 1.442695
        %v1785 = vpow.pop %v1784
        %v1786 = vmul.f32 %v1700, 1.442695
        %v1787 = vpow.pop %v1786
        %v1788 = vmul.f32 %v1701, 1.442695
        %v1789 = vpow.pop %v1788
        %v1790 = vmul.f32 %v1702, 1.442695
        %v1791 = vpow.pop %v1790
        %v1792 = vmul.f32 %v1703, 1.442695
        %v1793 = vpow.pop %v1792
        %v1794 = vmul.f32 %v1704, 1.442695
        %v1795 = vpow.pop %v1794
        %v1796 = vmul.f32 %v1705, 1.442695
        %v1797 = vpow.pop %v1796
        %v1798 = vmul.f32 %v1706, 1.442695
        %v1799 = vpow.pop %v1798
        %v1800 = vmul.f32 %v1707, 1.442695
        %v1801 = vpow.pop %v1800
        %v1802 = vmul.f32 %v1708, 1.442695
        %v1803 = vpow.pop %v1802
        %v1804 = vmul.f32 %v1709, 1.442695
        %v1805 = vpow.pop %v1804
        %v1806 = vmul.f32 %v1710, 1.442695
        %v1807 = vpow.pop %v1806
        %v1808 = vmul.f32 %v1711, 1.442695
        %v1809 = vpow.pop %v1808
        %v1810 = vmul.f32 %v1712, 1.442695
        %v1811 = vpow.pop %v1810
        %v1812 = vmul.f32 %v1713, 1.442695
        %v1813 = vpow.pop %v1812
        %v1814 = vmul.f32 %v1714, 1.442695
        %v1815 = vpow.pop %v1814
        %v1816 = vmul.f32 %v1715, 1.442695
        %v1817 = vpow.pop %v1816
        %v1818 = vmul.f32 %v1716, 1.442695
        %v1819 = vpow.pop %v1818
        %v1820 = vmul.f32 %v1717, 1.442695
        %v1821 = vpow.pop %v1820
        %v1822 = vmul.f32 %v1718, 1.442695
        %v1823 = vpow.pop %v1822
        %v1824 = vmul.f32 %v1719, 1.442695
        %v1825 = vpow.pop %v1824
        %v1826 = vmul.f32 %v1720, 1.442695
        %v1827 = vpow.pop %v1826
        %v1828 = vmul.f32 %v1721, 1.442695
        %v1829 = vpow.pop %v1828
        %v1830 = vmul.f32 %v1722, 1.442695
        %v1831 = vpow.pop %v1830
        %v1832 = vmul.f32 %v1723, 1.442695
        %v1833 = vpow.pop %v1832
        %v1834 = vmul.f32 %v1724, 1.442695
        %v1835 = vpow.pop %v1834
        %v1836 = vmul.f32 %v1725, 1.442695
        %v1837 = vpow.pop %v1836
        %v1838 = vmul.f32 %v1726, 1.442695
        %v1839 = vpow.pop %v1838
        %v1840 = vmul.f32 %v1727, 1.442695
        %v1841 = vpow.pop %v1840
        %v1842 = vmul.f32 %v1728, 1.442695
        %v1843 = vpow.pop %v1842
        %v1844 = vmul.f32 %v1729, 1.442695
        %v1845 = vpow.pop %v1844
        %v1846 = vmul.f32 %v1730, 1.442695
        %v1847 = vpow.pop %v1846
        %v1848 = vmul.f32 %v1731, 1.442695
        %v1849 = vpow.pop %v1848
        %v1850 = vmul.f32 %v1732, 1.442695
        %v1851 = vpow.pop %v1850
        %v1852 = vmul.f32 %v1733, 1.442695
        %v1853 = vpow.pop %v1852
        %v1854 = vmul.f32 %v1734, 1.442695
        %v1855 = vpow.pop %v1854
        %v1856 = vmul.f32 %v1735, 1.442695
        %v1857 = vpow.pop %v1856
        %v1858 = vmul.f32 %v1736, 1.442695
        %v1859 = vpow.pop %v1858
        %v1860 = vmul.f32 %v1737, 1.442695
        %v1861 = vpow.pop %v1860
        %v1862 = vmul.f32 %v1738, 1.442695
        %v1863 = vpow.pop %v1862
        %v1864 = vmul.f32 %v1739, 1.442695
        %v1865 = vpow.pop %v1864
        %v1866 = vmul.f32 %v1740, 1.442695
        %v1867 = vpow.pop %v1866
        %v1868 = vmul.f32 %v1741, 1.442695
        %v1869 = vpow.pop %v1868
        %v1870 = vadd.f32 %v1743, %v1747
        %v1871 = vadd.f32 %v1870, %v1751
        %v1872 = vadd.f32 %v1871, %v1755
        %v1873 = vadd.f32 %v1872, %v1759
        %v1874 = vadd.f32 %v1873, %v1763
        %v1875 = vadd.f32 %v1874, %v1767
        %v1876 = vadd.f32 %v1875, %v1771
        %v1877 = vadd.f32 %v1876, %v1775
        %v1878 = vadd.f32 %v1877, %v1779
        %v1879 = vadd.f32 %v1878, %v1783
        %v1880 = vadd.f32 %v1879, %v1787
        %v1881 = vadd.f32 %v1880, %v1791
        %v1882 = vadd.f32 %v1881, %v1795
        %v1883 = vadd.f32 %v1882, %v1799
        %v1884 = vadd.f32 %v1883, %v1803
        %v1885 = vadd.f32 %v1884, %v1807
        %v1886 = vadd.f32 %v1885, %v1811
        %v1887 = vadd.f32 %v1886, %v1815
        %v1888 = vadd.f32 %v1887, %v1819
        %v1889 = vadd.f32 %v1888, %v1823
        %v1890 = vadd.f32 %v1889, %v1827
        %v1891 = vadd.f32 %v1890, %v1831
        %v1892 = vadd.f32 %v1891, %v1835
        %v1893 = vadd.f32 %v1892, %v1839
        %v1894 = vadd.f32 %v1893, %v1843
        %v1895 = vadd.f32 %v1894, %v1847
        %v1896 = vadd.f32 %v1895, %v1851
        %v1897 = vadd.f32 %v1896, %v1855
        %v1898 = vadd.f32 %v1897, %v1859
        %v1899 = vadd.f32 %v1898, %v1863
        %v1900 = vadd.f32 %v1899, %v1867
        %v1901 = vrot.slane %v1900, 4
        %v1902 = vadd.f32 %v1900, %v1901
        %v1903 = vrot.slane %v1902, 2
        %v1904 = vadd.f32 %v1902, %v1903
        %v1905 = vrot.slane %v1904, 1
        %v1906 = vadd.f32 %v1904, %v1905
        %v1907 = vadd.f32 %v1745, %v1749
        %v1908 = vadd.f32 %v1907, %v1753
        %v1909 = vadd.f32 %v1908, %v1757
        %v1910 = vadd.f32 %v1909, %v1761
        %v1911 = vadd.f32 %v1910, %v1765
        %v1912 = vadd.f32 %v1911, %v1769
        %v1913 = vadd.f32 %v1912, %v1773
        %v1914 = vadd.f32 %v1913, %v1777
        %v1915 = vadd.f32 %v1914, %v1781
        %v1916 = vadd.f32 %v1915, %v1785
        %v1917 = vadd.f32 %v1916, %v1789
        %v1918 = vadd.f32 %v1917, %v1793
        %v1919 = vadd.f32 %v1918, %v1797
        %v1920 = vadd.f32 %v1919, %v1801
        %v1921 = vadd.f32 %v1920, %v1805
        %v1922 = vadd.f32 %v1921, %v1809
        %v1923 = vadd.f32 %v1922, %v1813
        %v1924 = vadd.f32 %v1923, %v1817
        %v1925 = vadd.f32 %v1924, %v1821
        %v1926 = vadd.f32 %v1925, %v1825
        %v1927 = vadd.f32 %v1926, %v1829
        %v1928 = vadd.f32 %v1927, %v1833
        %v1929 = vadd.f32 %v1928, %v1837
        %v1930 = vadd.f32 %v1929, %v1841
        %v1931 = vadd.f32 %v1930, %v1845
        %v1932 = vadd.f32 %v1931, %v1849
        %v1933 = vadd.f32 %v1932, %v1853
        %v1934 = vadd.f32 %v1933, %v1857
        %v1935 = vadd.f32 %v1934, %v1861
        %v1936 = vadd.f32 %v1935, %v1865
        %v1937 = vadd.f32 %v1936, %v1869
        %v1938 = vrot.slane %v1937, 4
        %v1939 = vadd.f32 %v1937, %v1938
        %v1940 = vrot.slane %v1939, 2
        %v1941 = vadd.f32 %v1939, %v1940
        %v1942 = vrot.slane %v1941, 1
        %v1943 = vadd.f32 %v1941, %v1942
        %v1944 = vpack.c.bf16 %v1747, %v1743
        %v1945 = vpack.c.bf16 %v1749, %v1745
        %v1946 = vpack.c.bf16 %v1755, %v1751
        %v1947 = vpack.c.bf16 %v1757, %v1753
        %v1948 = vpack.c.bf16 %v1763, %v1759
        %v1949 = vpack.c.bf16 %v1765, %v1761
        %v1950 = vpack.c.bf16 %v1771, %v1767
        %v1951 = vpack.c.bf16 %v1773, %v1769
        %v1952 = vpack.c.bf16 %v1779, %v1775
        %v1953 = vpack.c.bf16 %v1781, %v1777
        %v1954 = vpack.c.bf16 %v1787, %v1783
        %v1955 = vpack.c.bf16 %v1789, %v1785
        %v1956 = vpack.c.bf16 %v1795, %v1791
        %v1957 = vpack.c.bf16 %v1797, %v1793
        %v1958 = vpack.c.bf16 %v1803, %v1799
        %v1959 = vpack.c.bf16 %v1805, %v1801
        %v1960 = vpack.c.bf16 %v1811, %v1807
        %v1961 = vpack.c.bf16 %v1813, %v1809
        %v1962 = vpack.c.bf16 %v1819, %v1815
        %v1963 = vpack.c.bf16 %v1821, %v1817
        %v1964 = vpack.c.bf16 %v1827, %v1823
        %v1965 = vpack.c.bf16 %v1829, %v1825
        %v1966 = vpack.c.bf16 %v1835, %v1831
        %v1967 = vpack.c.bf16 %v1837, %v1833
        %v1968 = vpack.c.bf16 %v1843, %v1839
        %v1969 = vpack.c.bf16 %v1845, %v1841
        %v1970 = vpack.c.bf16 %v1851, %v1847
        %v1971 = vpack.c.bf16 %v1853, %v1849
        %v1972 = vpack.c.bf16 %v1859, %v1855
        %v1973 = vpack.c.bf16 %v1861, %v1857
        %v1974 = vpack.c.bf16 %v1867, %v1863
        %v1975 = vpack.c.bf16 %v1869, %v1865
        %v1978 = vrot.slane %v656, 2
        %v1979 = vrot.slane %v657, 2
        %1982 = vmatpush.bf16.msra.mxu0 %v1958
        %1983 = vmatpush.bf16.msra.mxu0 %v1956
        %1984 = vmatpush.bf16.msra.mxu0 %v1954
        %1985 = vmatpush.bf16.msra.mxu0 %v1952
        %1986 = vmatpush.bf16.msra.mxu0 %v1950
        %1987 = vmatpush.bf16.msra.mxu0 %v1948
        %1988 = vmatpush.bf16.msra.mxu0 %v1946
        %1989 = vmatpush.bf16.msra.mxu0 %v1944
        %1990 = vmatmul.bf16.gmra.mxu0 %v1978
        %v1991 = vpop.f32.mrf.mxu0
        %v1992 = vadd.f32 0.0, %v1991
        %v1993 = vpop.f32.mrf.mxu0
        %1994 = vdwg.mxu0
        %1995 = vmatpush.bf16.msra.mxu0 %v1974
        %1996 = vmatpush.bf16.msra.mxu0 %v1972
        %1997 = vmatpush.bf16.msra.mxu0 %v1970
        %1998 = vmatpush.bf16.msra.mxu0 %v1968
        %1999 = vmatpush.bf16.msra.mxu0 %v1966
        %2000 = vmatpush.bf16.msra.mxu0 %v1964
        %2001 = vmatpush.bf16.msra.mxu0 %v1962
        %2002 = vmatpush.bf16.msra.mxu0 %v1960
        %2003 = vmatmul.bf16.gmra.mxu0 %v1979
        %v2004 = vpop.f32.mrf.mxu0
        %v2005 = vadd.f32 %v1992, %v2004
        %v2006 = vpop.f32.mrf.mxu0
        %2007 = vdwg.mxu0
        %2008 = vmatpush.bf16.msra.mxu0 %v1959
        %2009 = vmatpush.bf16.msra.mxu0 %v1957
        %2010 = vmatpush.bf16.msra.mxu0 %v1955
        %2011 = vmatpush.bf16.msra.mxu0 %v1953
        %2012 = vmatpush.bf16.msra.mxu0 %v1951
        %2013 = vmatpush.bf16.msra.mxu0 %v1949
        %2014 = vmatpush.bf16.msra.mxu0 %v1947
        %2015 = vmatpush.bf16.msra.mxu0 %v1945
        %2016 = vmatmul.bf16.gmra.mxu0 %v1978
        %v2017 = vpop.f32.mrf.mxu0
        %v2018 = vadd.f32 0.0, %v2017
        %v2019 = vpop.f32.mrf.mxu0
        %2020 = vdwg.mxu0
        %2021 = vmatpush.bf16.msra.mxu0 %v1975
        %2022 = vmatpush.bf16.msra.mxu0 %v1973
        %2023 = vmatpush.bf16.msra.mxu0 %v1971
        %2024 = vmatpush.bf16.msra.mxu0 %v1969
        %2025 = vmatpush.bf16.msra.mxu0 %v1967
        %2026 = vmatpush.bf16.msra.mxu0 %v1965
        %2027 = vmatpush.bf16.msra.mxu0 %v1963
        %2028 = vmatpush.bf16.msra.mxu0 %v1961
        %2029 = vmatmul.bf16.gmra.mxu0 %v1979
        %v2030 = vpop.f32.mrf.mxu0
        %v2031 = vadd.f32 %v2018, %v2030
        %v2032 = vpop.f32.mrf.mxu0
        %2033 = vdwg.mxu0
        %v2034 = vrcp.pop %v1906
        %v2035 = vrcp.pop %v1943
        %v2036 = vmul.f32 %v2005, %v2034
        %v2037 = vmul.f32 %v2031, %v2035
        %v2040 = vrot.slane %v2036, 4
        %v2041 = vrot.slane %v2037, 4
        %v2044 = vsel %vm519, %v1318, %v2040
        %v2045 = vsel %vm519, %v1319, %v2041
        %v2046 = vpack.c.bf16 %v2044, %v2044
        %v2047 = vpack.c.bf16 %v2045, %v2045
        %v2048 = vpack.c.bf16 %v365, %v365
        %2049 = vset.pattern.permute.xlu0 84
        %2050 = vperm.xlu0 %2049, %v365
        %v2051 = vpop.permute.xlu0 %2050
        %2054 = vrot.lane.b32.xlu0 %v2048, 56
        %v2055 = vpop.permute.xlu0 %2054
        %v2057 = vsel %vm512, %v2055, 0
        %v2060 = vsel %vm519, %v2046, 0
        %v2063 = vsel %vm519, %v2047, 0
        %2065 = vmatpush.bf16.msra.mxu0 0
        %2066 = vmatpush.bf16.msra.mxu0 0
        %2067 = vmatpush.bf16.msra.mxu0 0
        %2068 = vmatpush.bf16.msra.mxu0 0
        %2069 = vmatpush.bf16.msra.mxu0 0
        %2070 = vmatpush.bf16.msra.mxu0 0
        %2071 = vmatpush.bf16.msra.mxu0 0
        %2072 = vmatpush.bf16.msra.mxu0 %v2060
        %2073 = vmatmul.bf16.gmra.mxu0 %v2057
        %v2074 = vpop.f32.mrf.mxu0
        %v2075 = vadd.f32 %v2051, %v2074
        %v2076 = vpop.f32.mrf.mxu0
        %2077 = vdwg.mxu0
        %2078 = vmatpush.bf16.msra.mxu0 0
        %2079 = vmatpush.bf16.msra.mxu0 0
        %2080 = vmatpush.bf16.msra.mxu0 0
        %2081 = vmatpush.bf16.msra.mxu0 0
        %2082 = vmatpush.bf16.msra.mxu0 0
        %2083 = vmatpush.bf16.msra.mxu0 0
        %2084 = vmatpush.bf16.msra.mxu0 0
        %2085 = vmatpush.bf16.msra.mxu0 %v2063
        %2086 = vmatmul.bf16.gmra.mxu0 %v2057
        %v2087 = vpop.f32.mrf.mxu0
        %v2088 = vadd.f32 %v2051, %v2087
        %v2089 = vpop.f32.mrf.mxu0
        %2090 = vdwg.mxu0
        %v2091 = vadd.f32 %v497, %v2075
        %v2092 = vadd.f32 %v498, %v2088
        %2093 = vst [vmem:[%s232] sm:$0xff] %v2091
        %2094 = vst [vmem:[%s232 + $0x8] sm:$0xff] %v2092
        %s2095 = sand.u32 %s119, 1
        %s2096 = scalar_lea.sflag [#allocation4], %s2095
        %s2097 = sand.u32 %s119, 1
        %s2098 = smul.addr %s2097, 16
        %s2099 = scalar_lea.vmem [#allocation7], %s2098
        // Predicated region
        $region45: #{tpu_custom_call.1} parent=35 // pred_check
          %p2100 = pneg %p129
        $region46: #{tpu_custom_call.1} parent=35 // pred_check_branch
          %2102 = sbr.rel (%p2100) target = $region48
        $region47: #{tpu_custom_call.1} parent=35 // pred_region
          %2104 = vsyncadd %s2096, 0
          %s2105 = smul.addr %s22, 2
          %s2106 = smul.addr %s2105, 8
          %s2107 = scalar_lea.hbm %s4, %s2106
          %s2109 = sshll.u32 %s2099, 4
          %s2110 = int_to_ptr.vmem [resolvable:$true] %s2109
          %s2111 = sshll.u32 %s2107, 4
          %s2112 = int_to_ptr.hbm [resolvable:$true] %s2111
          %2114 = dma.vmem_to_hbm [thread:$0]  %s2110, 256, %s2112, %s2096
        $region48: #{tpu_custom_call.1} parent=35 // pred_fallthru
          _
      $region36: #{tpu_custom_call.1} parent=5 // pred_fallthru
        _
      %p2115 = scmp.le.s32.totalorder 2, %s17
      // Predicated region
      $region49: #{tpu_custom_call.1} parent=5 // pred_check
        %p2116 = pneg %p2115
      $region50: #{tpu_custom_call.1} parent=5 // pred_check_branch
        %2118 = sbr.rel (%p2116) target = $region52
      $region51: #{tpu_custom_call.1} parent=5 // pred_region
        %s2119 = ssub.s32 %s17, 2
        // Predicated region
        $region53: #{tpu_custom_call.1} parent=51 // pred_check
          %p2120 = pneg %p135
        $region54: #{tpu_custom_call.1} parent=51 // pred_check_branch
          %2122 = sbr.rel (%p2120) target = $region56
        $region55: #{tpu_custom_call.1} parent=51 // pred_region
          %s2123 = sand.u32 %s120, 1
          %s2124 = scalar_lea.sflag [#allocation4], %s2123
          %s2125 = sand.u32 %s120, 1
          %s2126 = smul.addr %s2125, 16
          %s2127 = scalar_lea.vmem [#allocation7], %s2126
          %2129 = dma.done %s2124, 256
        $region56: #{tpu_custom_call.1} parent=51 // pred_fallthru
          _
      $region52: #{tpu_custom_call.1} parent=5 // pred_fallthru
        _
    $region6: #{tpu_custom_call.1} parent=1 // loop_footer
      %s21 = sadd.s32 1, %s17
    $region7: #{tpu_custom_call.1} parent=1 // loop_footer_branch
      %16 = sbr.rel target = $region3
    $region8: #{tpu_custom_call.1} parent=1 // loop_exit
      _
    %2130 = vsyncpa [#allocation3], 1
    %s2131 = scalar_lea.sflag [#allocation3], 1
    %2132 = vsyncpa %s2131, 1
    %2133 = vsyncpa [#allocation6], 1
    %2134 = vsyncpa [#allocation4], 1
    %s2135 = scalar_lea.sflag [#allocation4], 1
    %2136 = vsyncpa %s2135, 1

</llo_original>
